<compile_context>
chip_gen: v7x
topology: tpu7x:2x2x1
jax: 0.10.0
libtpu: 0.0.40
codegen_flags: <defaults>
</compile_context>

<pallas_src>
import functools

import jax
import jax.numpy as jnp
from jax import lax
from jax.experimental import pallas as pl
from jax.experimental.pallas import tpu as pltpu

H_PAD = 128        # lane padding for feature / hidden axes
EDGE_PACK = 128    # edge scores packed 128 per output vreg row


def _round_up(x, m):
    return (x + m - 1) // m * m


def _pad2(a, rows, cols, dtype=None):
    """Zero-pad 2D array `a` to (rows, cols), optionally casting dtype."""
    dt = a.dtype if dtype is None else dtype
    out = jnp.zeros((rows, cols), dt)
    return out.at[:a.shape[0], :a.shape[1]].set(a.astype(dt))


# --------------------------- fused forward kernel ----------------------------
def fused_model_kernel(adj_ru_ref, adj_ur_ref, xu_ref, xr_ref,
                       wfu_ref, wfr_ref, bl_r_ref, bl_u_ref,
                       w1_ref, b1_ref, w2_ref, b2_ref, w3_ref, b3_ref,
                       row_ref, col_ref, out_ref, *, num_layers):
    f32 = jnp.float32
    bf16 = jnp.bfloat16
    H = H_PAD

    adj_ru = adj_ru_ref[...]          # (Nr, Nu) bf16, row-normalized
    adj_ur = adj_ur_ref[...]          # (Nu, Nr) bf16
    zu = xu_ref[...]                  # (Nu, H_PAD) bf16
    zr = xr_ref[...]                  # (Nr, H_PAD) bf16

    # --- encoder: 3 hetero SAGE layers, all VMEM/vreg-resident -------------
    for l in range(num_layers):
        relu = l < num_layers - 1
        # 256-wide fused projections: one MXU matmul per source node type.
        #   pu[:, :H]  = zu @ wl_rest^T  (aggregated into restaurants)
        #   pu[:, H:]  = zu @ wr_user^T  (user self term)
        #   pr[:, :H]  = zr @ wr_rest^T  (restaurant self term)
        #   pr[:, H:]  = zr @ wl_user^T  (aggregated into users)
        pu = jnp.dot(zu, wfu_ref[l], preferred_element_type=f32)   # (Nu, 2H)
        pr = jnp.dot(zr, wfr_ref[l], preferred_element_type=f32)   # (Nr, 2H)

        # Dominant aggregation matmuls in bf16 (f32 accumulation).
        agg_r = jnp.dot(adj_ru, pu[:, :H].astype(bf16),
                        preferred_element_type=f32)                # (Nr, H)
        agg_u = jnp.dot(adj_ur, pr[:, H:].astype(bf16),
                        preferred_element_type=f32)                # (Nu, H)

        new_zr = agg_r + pr[:, :H] + bl_r_ref[l]                   # f32 epilogue
        new_zu = agg_u + pu[:, H:] + bl_u_ref[l]
        if relu:
            new_zr = jnp.maximum(new_zr, 0.0)
            new_zu = jnp.maximum(new_zu, 0.0)
        zr = new_zr.astype(bf16)
        zu = new_zu.astype(bf16)

    # --- edge gather via one-hot matmuls (padded edges -> idx -1 -> zeros) --
    # TODO(synk): index-driven gather for large E*N (see header).
    e_p = out_ref.shape[1]
    n_u = zu.shape[0]
    n_r = zr.shape[0]
    gu = (lax.broadcasted_iota(jnp.int32, (e_p, n_u), 1)
          == row_ref[...]).astype(bf16)                            # (E, Nu)
    gr = (lax.broadcasted_iota(jnp.int32, (e_p, n_r), 1)
          == col_ref[...]).astype(bf16)                            # (E, Nr)
    zu_e = jnp.dot(gu, zu, preferred_element_type=f32).astype(bf16)  # (E, H)
    zr_e = jnp.dot(gr, zr, preferred_element_type=f32).astype(bf16)  # (E, H)

    # --- decoder MLP --------------------------------------------------------
    # lin1 as one K=256 matmul on the lane-concatenated embeddings.
    zcat = jnp.concatenate([zu_e, zr_e], axis=-1)                  # (E, 2H) bf16
    h = jnp.dot(zcat, w1_ref[...], preferred_element_type=f32) + b1_ref[...]
    h = jnp.maximum(h, 0.0).astype(bf16)
    h = jnp.dot(h, w2_ref[...], preferred_element_type=f32) + b2_ref[...]
    h = jnp.maximum(h, 0.0).astype(bf16)

    # Final 1-wide layer: lane-packed scores (8, E) with real scores in row 0
    # (w3 zero-padded rows 1..7) -> unmasked lane-dense store, 4 B per real
    # score lane instead of a 128-lane-padded matmul + (E,128) f32 writeback.
    scores = jnp.einsum('od,ed->oe', w3_ref[...], h,
                        preferred_element_type=f32)                # (8, E)
    out_ref[...] = scores + b3_ref[...]


# --------------------------------- wrappers -----------------------------------
def single_edge_model_forward(prep, graph, x_user, x_rest, edge_label_index):
    """prep: pre-transposed/padded/bf16 params from prepare_params().
    graph: padded bf16 adjacencies from prepare_graph() (hoisted, per-graph)."""
    n_u_p = graph['adj_ur'].shape[0]
    n_r_p = graph['adj_ru'].shape[0]
    xu = _pad2(x_user, n_u_p, H_PAD, jnp.bfloat16)
    xr = _pad2(x_rest, n_r_p, H_PAD, jnp.bfloat16)

    row, col = edge_label_index
    e = row.shape[0]
    e_p = _round_up(e, EDGE_PACK)
    row_p = jnp.full((e_p, 1), -1, jnp.int32).at[:e, 0].set(row.astype(jnp.int32))
    col_p = jnp.full((e_p, 1), -1, jnp.int32).at[:e, 0].set(col.astype(jnp.int32))

    operands = (graph['adj_ru'], graph['adj_ur'], xu, xr,
                prep['w_from_u'], prep['w_from_r'], prep['bl_r'], prep['bl_u'],
                prep['w1'], prep['b1'], prep['w2'], prep['b2'],
                prep['w3'], prep['b3'], row_p, col_p)

    # Raise the scoped VMEM limit above the 16/32 MiB defaults, sized from the
    # actual operand footprint and clamped below physical VMEM (64 MiB on v7x).
    nbytes = sum(int(o.size) * o.dtype.itemsize for o in operands)
    nbytes += 8 * e_p * 4  # output
    try:
        phys_vmem = int(pltpu.get_tpu_info().vmem_capacity_bytes)
    except Exception:
        phys_vmem = 64 << 20
    vmem_limit = int(max(min(4 * nbytes + (16 << 20), phys_vmem - (4 << 20)),
                         32 << 20))

    vmem = pl.BlockSpec(memory_space=pltpu.MemorySpace.VMEM)
    kern = functools.partial(fused_model_kernel, num_layers=3)
    out = pl.pallas_call(
        kern,
        out_shape=jax.ShapeDtypeStruct((8, e_p), jnp.float32),
        in_specs=[vmem] * len(operands),
        out_specs=vmem,
        compiler_params=pltpu.CompilerParams(vmem_limit_bytes=vmem_limit),
    )(*operands)
    return out[0, :e]  # z.view(-1)


def prepare_params(params):
    """One-time hoisted preprocessing: transpose, zero-pad to 128 lanes, cast
    matmul weights to bf16, and fuse per-source weights into 256-lane blocks."""
    bf16 = jnp.bfloat16

    def w_t_pad(w):   # torch (out, in) -> (in, out) padded to (H_PAD, H_PAD)
        return _pad2(w.T, H_PAD, H_PAD, bf16)

    def b_pad(b, width=H_PAD):
        return _pad2(b.reshape(1, -1), 1, width, jnp.float32)

    prep = {}
    # Fused per-source projections:
    #   z_user -> [wl_rest | wr_user],  z_rest -> [wr_rest | wl_user]
    wfu, wfr, bl_r, bl_u = [], [], [], []
    for l in (1, 2, 3):
        r = params[f'conv{l}']['rest']
        u = params[f'conv{l}']['user']
        wfu.append(jnp.concatenate([w_t_pad(r['wl']), w_t_pad(u['wr'])], axis=1))
        wfr.append(jnp.concatenate([w_t_pad(r['wr']), w_t_pad(u['wl'])], axis=1))
        bl_r.append(b_pad(r['bl']))
        bl_u.append(b_pad(u['bl']))
    prep['w_from_u'] = jnp.stack(wfu)        # (3, H_PAD, 2*H_PAD) bf16
    prep['w_from_r'] = jnp.stack(wfr)        # (3, H_PAD, 2*H_PAD) bf16
    prep['bl_r'] = jnp.stack(bl_r)           # (3, 1, H_PAD) f32
    prep['bl_u'] = jnp.stack(bl_u)

    d = params['decoder']
    hidden = d['w2'].shape[0]
    # lin1 stacked for the K=256 concatenated input [z_user | z_rest].
    w1u = _pad2(d['w1'][:, :hidden].T, H_PAD, H_PAD, bf16)
    w1r = _pad2(d['w1'][:, hidden:].T, H_PAD, H_PAD, bf16)
    prep['w1'] = jnp.concatenate([w1u, w1r], axis=0)   # (2*H_PAD, H_PAD)
    prep['b1'] = b_pad(d['b1'])
    prep['w2'] = w_t_pad(d['w2'])
    prep['b2'] = b_pad(d['b2'])
    prep['w3'] = _pad2(d['w3'], 8, H_PAD, bf16)        # real w3 in row 0
    prep['b3'] = _pad2(d['b3'].reshape(1, 1), 1, 1, jnp.float32)
    return prep


# --------------------------------- glue --------------------------------------
def dense_mean_adj(edge_index, n_src, n_dst):
    """Dense row-normalized adjacency A[d, s] for mean aggregation (PyG-style:
    empty neighborhood -> zeros)."""
    src, dst = edge_index
    counts = jnp.zeros((n_dst, n_src), jnp.float32).at[dst, src].add(1.0)
    deg = counts.sum(axis=1, keepdims=True)
    return counts / jnp.maximum(deg, 1.0)


def prepare_graph(edge_index_fwd, edge_index_rev, n_user, n_rest):
    """One-time per-graph prep (hoisted out of the forward path): build the
    dense mean-normalized adjacencies, pad, and cast to bf16 for the MXU."""
    n_u_p = _round_up(n_user, 8)
    n_r_p = _round_up(n_rest, 8)
    adj_ru = dense_mean_adj(edge_index_fwd, n_user, n_rest)   # (Nr, Nu)
    adj_ur = dense_mean_adj(edge_index_rev, n_rest, n_user)   # (Nu, Nr)
    return {
        'adj_ru': _pad2(adj_ru, n_r_p, n_u_p, jnp.bfloat16),
        'adj_ur': _pad2(adj_ur, n_u_p, n_r_p, jnp.bfloat16),
    }


def init_linear(key, out_f, in_f, bias=True):
    k1, k2 = jax.random.split(key)
    bound = 1.0 / jnp.sqrt(float(in_f))
    w = jax.random.uniform(k1, (out_f, in_f), jnp.float32, -bound, bound)
    if not bias:
        return w, None
    b = jax.random.uniform(k2, (out_f,), jnp.float32, -bound, bound)
    return w, b


def init_params(key, hidden, f_user, f_rest):
    ks = list(jax.random.split(key, 16))
    params = {}
    # conv1: bipartite in-dims differ per edge type / direction
    wl, bl = init_linear(ks[0], hidden, f_user)          # dst = restaurant
    wr, _ = init_linear(ks[1], hidden, f_rest, bias=False)
    rest1 = {'wl': wl, 'bl': bl, 'wr': wr}
    wl, bl = init_linear(ks[2], hidden, f_rest)          # dst = user
    wr, _ = init_linear(ks[3], hidden, f_user, bias=False)
    user1 = {'wl': wl, 'bl': bl, 'wr': wr}
    params['conv1'] = {'rest': rest1, 'user': user1}
    for li, base in ((2, 4), (3, 8)):
        wl, bl = init_linear(ks[base + 0], hidden, hidden)
        wr, _ = init_linear(ks[base + 1], hidden, hidden, bias=False)
        rest = {'wl': wl, 'bl': bl, 'wr': wr}
        wl, bl = init_linear(ks[base + 2], hidden, hidden)
        wr, _ = init_linear(ks[base + 3], hidden, hidden, bias=False)
        user = {'wl': wl, 'bl': bl, 'wr': wr}
        params[f'conv{li}'] = {'rest': rest, 'user': user}
    w1, b1 = init_linear(ks[12], hidden, 2 * hidden)
    w2, b2 = init_linear(ks[13], hidden, hidden)
    w3, b3 = init_linear(ks[14], 1, hidden)
    params['decoder'] = {'w1': w1, 'b1': b1, 'w2': w2, 'b2': b2,
                         'w3': w3, 'b3': b3}
    return params


if __name__ == "__main__":
    hidden = 32
    n_user, n_rest = 16, 24
    f_user, f_rest = 16, 8
    n_edges, n_label = 48, 32

    key = jax.random.PRNGKey(0)
    kx1, kx2, ke, kl1, kl2, kp = jax.random.split(key, 6)

    x_user = jax.random.normal(kx1, (n_user, f_user), jnp.float32)
    x_rest = jax.random.normal(kx2, (n_rest, f_rest), jnp.float32)

    eu = jax.random.randint(ke, (n_edges,), 0, n_user)
    er = jax.random.randint(jax.random.fold_in(ke, 1), (n_edges,), 0, n_rest)
    edge_index_fwd = jnp.stack([eu, er])          # ('user','rates','restaurant')
    edge_index_rev = jnp.stack([er, eu])          # reverse edge type

    lrow = jax.random.randint(kl1, (n_label,), 0, n_user)
    lcol = jax.random.randint(kl2, (n_label,), 0, n_rest)
    edge_label_index = jnp.stack([lrow, lcol])

    params = init_params(kp, hidden, f_user, f_rest)
    prep = prepare_params(params)                  # hoisted weight prep (once)
    graph = prepare_graph(edge_index_fwd, edge_index_rev,
                          n_user, n_rest)          # hoisted graph prep (once)

    fwd = jax.jit(single_edge_model_forward)
    out = fwd(prep, graph, x_user, x_rest, edge_label_index)
    out = jax.block_until_ready(out)
    assert out.shape == (n_label,), out.shape
    print("KERNEL_OK")
</pallas_src>

<mosaic_0001>
module attributes {stable_mosaic.version = 11 : i64} {
  func.func @fused_model_kernel(%arg0: memref<24x16xbf16, #tpu.memory_space<vmem>>, %arg1: memref<16x24xbf16, #tpu.memory_space<vmem>>, %arg2: memref<16x128xbf16, #tpu.memory_space<vmem>>, %arg3: memref<24x128xbf16, #tpu.memory_space<vmem>>, %arg4: memref<3x128x256xbf16, #tpu.memory_space<vmem>>, %arg5: memref<3x128x256xbf16, #tpu.memory_space<vmem>>, %arg6: memref<3x1x128xf32, #tpu.memory_space<vmem>>, %arg7: memref<3x1x128xf32, #tpu.memory_space<vmem>>, %arg8: memref<256x128xbf16, #tpu.memory_space<vmem>>, %arg9: memref<1x128xf32, #tpu.memory_space<vmem>>, %arg10: memref<128x128xbf16, #tpu.memory_space<vmem>>, %arg11: memref<1x128xf32, #tpu.memory_space<vmem>>, %arg12: memref<8x128xbf16, #tpu.memory_space<vmem>>, %arg13: memref<1x1xf32, #tpu.memory_space<vmem>>, %arg14: memref<128x1xi32, #tpu.memory_space<vmem>>, %arg15: memref<128x1xi32, #tpu.memory_space<vmem>>, %arg16: memref<8x128xf32, #tpu.memory_space<vmem>>) attributes {dimension_semantics = [], scalar_prefetch = 0 : i64, scratch_operands = 0 : i64, tpu.core_type = #tpu.core_type<tc>} {
    %c0 = arith.constant 0 : index
    %c0_0 = arith.constant 0 : index
    %0 = vector.load %arg0[%c0, %c0_0] : memref<24x16xbf16, #tpu.memory_space<vmem>>, vector<24x16xbf16>
    %c0_1 = arith.constant 0 : index
    %c0_2 = arith.constant 0 : index
    %1 = vector.load %arg1[%c0_1, %c0_2] : memref<16x24xbf16, #tpu.memory_space<vmem>>, vector<16x24xbf16>
    %c0_3 = arith.constant 0 : index
    %c0_4 = arith.constant 0 : index
    %2 = vector.load %arg2[%c0_3, %c0_4] : memref<16x128xbf16, #tpu.memory_space<vmem>>, vector<16x128xbf16>
    %c0_5 = arith.constant 0 : index
    %c0_6 = arith.constant 0 : index
    %3 = vector.load %arg3[%c0_5, %c0_6] : memref<24x128xbf16, #tpu.memory_space<vmem>>, vector<24x128xbf16>
    %c0_7 = arith.constant 0 : index
    %c0_8 = arith.constant 0 : index
    %c0_9 = arith.constant 0 : index
    %4 = vector.load %arg4[%c0_7, %c0_8, %c0_9] : memref<3x128x256xbf16, #tpu.memory_space<vmem>>, vector<1x128x256xbf16>
    %5 = vector.shape_cast %4 : vector<1x128x256xbf16> to vector<128x256xbf16>
    %cst = arith.constant dense<0.000000e+00> : vector<16x256xf32>
    %6 = tpu.matmul %2, %5, %cst {dimension_numbers = #tpu.dot_dimension_numbers<[1], [0], [0], [1], [0, 0, 1, 1], [], []>} : vector<16x128xbf16>, vector<128x256xbf16>, vector<16x256xf32> -> vector<16x256xf32>
    %c0_10 = arith.constant 0 : index
    %c0_11 = arith.constant 0 : index
    %c0_12 = arith.constant 0 : index
    %7 = vector.load %arg5[%c0_10, %c0_11, %c0_12] : memref<3x128x256xbf16, #tpu.memory_space<vmem>>, vector<1x128x256xbf16>
    %8 = vector.shape_cast %7 : vector<1x128x256xbf16> to vector<128x256xbf16>
    %cst_13 = arith.constant dense<0.000000e+00> : vector<24x256xf32>
    %9 = tpu.matmul %3, %8, %cst_13 {dimension_numbers = #tpu.dot_dimension_numbers<[1], [0], [0], [1], [0, 0, 1, 1], [], []>} : vector<24x128xbf16>, vector<128x256xbf16>, vector<24x256xf32> -> vector<24x256xf32>
    %10 = vector.extract_strided_slice %6 {offsets = [0, 0], sizes = [16, 128], strides = [1, 1]} : vector<16x256xf32> to vector<16x128xf32>
    %11 = arith.truncf %10 : vector<16x128xf32> to vector<16x128xbf16>
    %cst_14 = arith.constant dense<0.000000e+00> : vector<24x128xf32>
    %12 = tpu.matmul %0, %11, %cst_14 {dimension_numbers = #tpu.dot_dimension_numbers<[1], [0], [0], [1], [0, 0, 1, 1], [], []>} : vector<24x16xbf16>, vector<16x128xbf16>, vector<24x128xf32> -> vector<24x128xf32>
    %13 = vector.extract_strided_slice %9 {offsets = [0, 128], sizes = [24, 128], strides = [1, 1]} : vector<24x256xf32> to vector<24x128xf32>
    %14 = arith.truncf %13 : vector<24x128xf32> to vector<24x128xbf16>
    %cst_15 = arith.constant dense<0.000000e+00> : vector<16x128xf32>
    %15 = tpu.matmul %1, %14, %cst_15 {dimension_numbers = #tpu.dot_dimension_numbers<[1], [0], [0], [1], [0, 0, 1, 1], [], []>} : vector<16x24xbf16>, vector<24x128xbf16>, vector<16x128xf32> -> vector<16x128xf32>
    %16 = vector.extract_strided_slice %9 {offsets = [0, 0], sizes = [24, 128], strides = [1, 1]} : vector<24x256xf32> to vector<24x128xf32>
    %17 = arith.addf %12, %16 : vector<24x128xf32>
    %c0_16 = arith.constant 0 : index
    %c0_17 = arith.constant 0 : index
    %c0_18 = arith.constant 0 : index
    %18 = vector.load %arg6[%c0_16, %c0_17, %c0_18] : memref<3x1x128xf32, #tpu.memory_space<vmem>>, vector<1x1x128xf32>
    %19 = vector.shape_cast %18 : vector<1x1x128xf32> to vector<1x128xf32>
    %20 = vector.broadcast %19 : vector<1x128xf32> to vector<24x128xf32>
    %21 = arith.addf %17, %20 : vector<24x128xf32>
    %22 = vector.extract_strided_slice %6 {offsets = [0, 128], sizes = [16, 128], strides = [1, 1]} : vector<16x256xf32> to vector<16x128xf32>
    %23 = arith.addf %15, %22 : vector<16x128xf32>
    %c0_19 = arith.constant 0 : index
    %c0_20 = arith.constant 0 : index
    %c0_21 = arith.constant 0 : index
    %24 = vector.load %arg7[%c0_19, %c0_20, %c0_21] : memref<3x1x128xf32, #tpu.memory_space<vmem>>, vector<1x1x128xf32>
    %25 = vector.shape_cast %24 : vector<1x1x128xf32> to vector<1x128xf32>
    %26 = vector.broadcast %25 : vector<1x128xf32> to vector<16x128xf32>
    %27 = arith.addf %23, %26 : vector<16x128xf32>
    %cst_22 = arith.constant 0.000000e+00 : f32
    %28 = vector.broadcast %cst_22 : f32 to vector<24x128xf32>
    %29 = arith.maximumf %21, %28 : vector<24x128xf32>
    %cst_23 = arith.constant 0.000000e+00 : f32
    %30 = vector.broadcast %cst_23 : f32 to vector<16x128xf32>
    %31 = arith.maximumf %27, %30 : vector<16x128xf32>
    %32 = arith.truncf %29 : vector<24x128xf32> to vector<24x128xbf16>
    %33 = arith.truncf %31 : vector<16x128xf32> to vector<16x128xbf16>
    %c1 = arith.constant 1 : index
    %c0_24 = arith.constant 0 : index
    %c0_25 = arith.constant 0 : index
    %34 = vector.load %arg4[%c1, %c0_24, %c0_25] : memref<3x128x256xbf16, #tpu.memory_space<vmem>>, vector<1x128x256xbf16>
    %35 = vector.shape_cast %34 : vector<1x128x256xbf16> to vector<128x256xbf16>
    %cst_26 = arith.constant dense<0.000000e+00> : vector<16x256xf32>
    %36 = tpu.matmul %33, %35, %cst_26 {dimension_numbers = #tpu.dot_dimension_numbers<[1], [0], [0], [1], [0, 0, 1, 1], [], []>} : vector<16x128xbf16>, vector<128x256xbf16>, vector<16x256xf32> -> vector<16x256xf32>
    %c1_27 = arith.constant 1 : index
    %c0_28 = arith.constant 0 : index
    %c0_29 = arith.constant 0 : index
    %37 = vector.load %arg5[%c1_27, %c0_28, %c0_29] : memref<3x128x256xbf16, #tpu.memory_space<vmem>>, vector<1x128x256xbf16>
    %38 = vector.shape_cast %37 : vector<1x128x256xbf16> to vector<128x256xbf16>
    %cst_30 = arith.constant dense<0.000000e+00> : vector<24x256xf32>
    %39 = tpu.matmul %32, %38, %cst_30 {dimension_numbers = #tpu.dot_dimension_numbers<[1], [0], [0], [1], [0, 0, 1, 1], [], []>} : vector<24x128xbf16>, vector<128x256xbf16>, vector<24x256xf32> -> vector<24x256xf32>
    %40 = vector.extract_strided_slice %36 {offsets = [0, 0], sizes = [16, 128], strides = [1, 1]} : vector<16x256xf32> to vector<16x128xf32>
    %41 = arith.truncf %40 : vector<16x128xf32> to vector<16x128xbf16>
    %cst_31 = arith.constant dense<0.000000e+00> : vector<24x128xf32>
    %42 = tpu.matmul %0, %41, %cst_31 {dimension_numbers = #tpu.dot_dimension_numbers<[1], [0], [0], [1], [0, 0, 1, 1], [], []>} : vector<24x16xbf16>, vector<16x128xbf16>, vector<24x128xf32> -> vector<24x128xf32>
    %43 = vector.extract_strided_slice %39 {offsets = [0, 128], sizes = [24, 128], strides = [1, 1]} : vector<24x256xf32> to vector<24x128xf32>
    %44 = arith.truncf %43 : vector<24x128xf32> to vector<24x128xbf16>
    %cst_32 = arith.constant dense<0.000000e+00> : vector<16x128xf32>
    %45 = tpu.matmul %1, %44, %cst_32 {dimension_numbers = #tpu.dot_dimension_numbers<[1], [0], [0], [1], [0, 0, 1, 1], [], []>} : vector<16x24xbf16>, vector<24x128xbf16>, vector<16x128xf32> -> vector<16x128xf32>
    %46 = vector.extract_strided_slice %39 {offsets = [0, 0], sizes = [24, 128], strides = [1, 1]} : vector<24x256xf32> to vector<24x128xf32>
    %47 = arith.addf %42, %46 : vector<24x128xf32>
    %c1_33 = arith.constant 1 : index
    %c0_34 = arith.constant 0 : index
    %c0_35 = arith.constant 0 : index
    %48 = vector.load %arg6[%c1_33, %c0_34, %c0_35] : memref<3x1x128xf32, #tpu.memory_space<vmem>>, vector<1x1x128xf32>
    %49 = vector.shape_cast %48 : vector<1x1x128xf32> to vector<1x128xf32>
    %50 = vector.broadcast %49 : vector<1x128xf32> to vector<24x128xf32>
    %51 = arith.addf %47, %50 : vector<24x128xf32>
    %52 = vector.extract_strided_slice %36 {offsets = [0, 128], sizes = [16, 128], strides = [1, 1]} : vector<16x256xf32> to vector<16x128xf32>
    %53 = arith.addf %45, %52 : vector<16x128xf32>
    %c1_36 = arith.constant 1 : index
    %c0_37 = arith.constant 0 : index
    %c0_38 = arith.constant 0 : index
    %54 = vector.load %arg7[%c1_36, %c0_37, %c0_38] : memref<3x1x128xf32, #tpu.memory_space<vmem>>, vector<1x1x128xf32>
    %55 = vector.shape_cast %54 : vector<1x1x128xf32> to vector<1x128xf32>
    %56 = vector.broadcast %55 : vector<1x128xf32> to vector<16x128xf32>
    %57 = arith.addf %53, %56 : vector<16x128xf32>
    %cst_39 = arith.constant 0.000000e+00 : f32
    %58 = vector.broadcast %cst_39 : f32 to vector<24x128xf32>
    %59 = arith.maximumf %51, %58 : vector<24x128xf32>
    %cst_40 = arith.constant 0.000000e+00 : f32
    %60 = vector.broadcast %cst_40 : f32 to vector<16x128xf32>
    %61 = arith.maximumf %57, %60 : vector<16x128xf32>
    %62 = arith.truncf %59 : vector<24x128xf32> to vector<24x128xbf16>
    %63 = arith.truncf %61 : vector<16x128xf32> to vector<16x128xbf16>
    %c2 = arith.constant 2 : index
    %c0_41 = arith.constant 0 : index
    %c0_42 = arith.constant 0 : index
    %64 = vector.load %arg4[%c2, %c0_41, %c0_42] : memref<3x128x256xbf16, #tpu.memory_space<vmem>>, vector<1x128x256xbf16>
    %65 = vector.shape_cast %64 : vector<1x128x256xbf16> to vector<128x256xbf16>
    %cst_43 = arith.constant dense<0.000000e+00> : vector<16x256xf32>
    %66 = tpu.matmul %63, %65, %cst_43 {dimension_numbers = #tpu.dot_dimension_numbers<[1], [0], [0], [1], [0, 0, 1, 1], [], []>} : vector<16x128xbf16>, vector<128x256xbf16>, vector<16x256xf32> -> vector<16x256xf32>
    %c2_44 = arith.constant 2 : index
    %c0_45 = arith.constant 0 : index
    %c0_46 = arith.constant 0 : index
    %67 = vector.load %arg5[%c2_44, %c0_45, %c0_46] : memref<3x128x256xbf16, #tpu.memory_space<vmem>>, vector<1x128x256xbf16>
    %68 = vector.shape_cast %67 : vector<1x128x256xbf16> to vector<128x256xbf16>
    %cst_47 = arith.constant dense<0.000000e+00> : vector<24x256xf32>
    %69 = tpu.matmul %62, %68, %cst_47 {dimension_numbers = #tpu.dot_dimension_numbers<[1], [0], [0], [1], [0, 0, 1, 1], [], []>} : vector<24x128xbf16>, vector<128x256xbf16>, vector<24x256xf32> -> vector<24x256xf32>
    %70 = vector.extract_strided_slice %66 {offsets = [0, 0], sizes = [16, 128], strides = [1, 1]} : vector<16x256xf32> to vector<16x128xf32>
    %71 = arith.truncf %70 : vector<16x128xf32> to vector<16x128xbf16>
    %cst_48 = arith.constant dense<0.000000e+00> : vector<24x128xf32>
    %72 = tpu.matmul %0, %71, %cst_48 {dimension_numbers = #tpu.dot_dimension_numbers<[1], [0], [0], [1], [0, 0, 1, 1], [], []>} : vector<24x16xbf16>, vector<16x128xbf16>, vector<24x128xf32> -> vector<24x128xf32>
    %73 = vector.extract_strided_slice %69 {offsets = [0, 128], sizes = [24, 128], strides = [1, 1]} : vector<24x256xf32> to vector<24x128xf32>
    %74 = arith.truncf %73 : vector<24x128xf32> to vector<24x128xbf16>
    %cst_49 = arith.constant dense<0.000000e+00> : vector<16x128xf32>
    %75 = tpu.matmul %1, %74, %cst_49 {dimension_numbers = #tpu.dot_dimension_numbers<[1], [0], [0], [1], [0, 0, 1, 1], [], []>} : vector<16x24xbf16>, vector<24x128xbf16>, vector<16x128xf32> -> vector<16x128xf32>
    %76 = vector.extract_strided_slice %69 {offsets = [0, 0], sizes = [24, 128], strides = [1, 1]} : vector<24x256xf32> to vector<24x128xf32>
    %77 = arith.addf %72, %76 : vector<24x128xf32>
    %c2_50 = arith.constant 2 : index
    %c0_51 = arith.constant 0 : index
    %c0_52 = arith.constant 0 : index
    %78 = vector.load %arg6[%c2_50, %c0_51, %c0_52] : memref<3x1x128xf32, #tpu.memory_space<vmem>>, vector<1x1x128xf32>
    %79 = vector.shape_cast %78 : vector<1x1x128xf32> to vector<1x128xf32>
    %80 = vector.broadcast %79 : vector<1x128xf32> to vector<24x128xf32>
    %81 = arith.addf %77, %80 : vector<24x128xf32>
    %82 = vector.extract_strided_slice %66 {offsets = [0, 128], sizes = [16, 128], strides = [1, 1]} : vector<16x256xf32> to vector<16x128xf32>
    %83 = arith.addf %75, %82 : vector<16x128xf32>
    %c2_53 = arith.constant 2 : index
    %c0_54 = arith.constant 0 : index
    %c0_55 = arith.constant 0 : index
    %84 = vector.load %arg7[%c2_53, %c0_54, %c0_55] : memref<3x1x128xf32, #tpu.memory_space<vmem>>, vector<1x1x128xf32>
    %85 = vector.shape_cast %84 : vector<1x1x128xf32> to vector<1x128xf32>
    %86 = vector.broadcast %85 : vector<1x128xf32> to vector<16x128xf32>
    %87 = arith.addf %83, %86 : vector<16x128xf32>
    %88 = arith.truncf %81 : vector<24x128xf32> to vector<24x128xbf16>
    %89 = arith.truncf %87 : vector<16x128xf32> to vector<16x128xbf16>
    %90 = tpu.iota {dimensions = array<i32: 1>} : vector<128x16xi32>
    %c0_56 = arith.constant 0 : index
    %c0_57 = arith.constant 0 : index
    %91 = vector.load %arg14[%c0_56, %c0_57] : memref<128x1xi32, #tpu.memory_space<vmem>>, vector<128x1xi32>
    %92 = vector.broadcast %91 : vector<128x1xi32> to vector<128x16xi32>
    %93 = arith.cmpi eq, %90, %92 : vector<128x16xi32>
    %94 = arith.extui %93 : vector<128x16xi1> to vector<128x16xi32>
    %95 = arith.sitofp %94 : vector<128x16xi32> to vector<128x16xf32>
    %96 = arith.truncf %95 : vector<128x16xf32> to vector<128x16xbf16>
    %97 = tpu.iota {dimensions = array<i32: 1>} : vector<128x24xi32>
    %c0_58 = arith.constant 0 : index
    %c0_59 = arith.constant 0 : index
    %98 = vector.load %arg15[%c0_58, %c0_59] : memref<128x1xi32, #tpu.memory_space<vmem>>, vector<128x1xi32>
    %99 = vector.broadcast %98 : vector<128x1xi32> to vector<128x24xi32>
    %100 = arith.cmpi eq, %97, %99 : vector<128x24xi32>
    %101 = arith.extui %100 : vector<128x24xi1> to vector<128x24xi32>
    %102 = arith.sitofp %101 : vector<128x24xi32> to vector<128x24xf32>
    %103 = arith.truncf %102 : vector<128x24xf32> to vector<128x24xbf16>
    %cst_60 = arith.constant dense<0.000000e+00> : vector<128x128xf32>
    %104 = tpu.matmul %96, %89, %cst_60 {dimension_numbers = #tpu.dot_dimension_numbers<[1], [0], [0], [1], [0, 0, 1, 1], [], []>} : vector<128x16xbf16>, vector<16x128xbf16>, vector<128x128xf32> -> vector<128x128xf32>
    %105 = arith.truncf %104 : vector<128x128xf32> to vector<128x128xbf16>
    %cst_61 = arith.constant dense<0.000000e+00> : vector<128x128xf32>
    %106 = tpu.matmul %103, %88, %cst_61 {dimension_numbers = #tpu.dot_dimension_numbers<[1], [0], [0], [1], [0, 0, 1, 1], [], []>} : vector<128x24xbf16>, vector<24x128xbf16>, vector<128x128xf32> -> vector<128x128xf32>
    %107 = arith.truncf %106 : vector<128x128xf32> to vector<128x128xbf16>
    %108 = tpu.concatenate %105, %107 in 1 : vector<128x128xbf16>, vector<128x128xbf16> -> vector<128x256xbf16>
    %c0_62 = arith.constant 0 : index
    %c0_63 = arith.constant 0 : index
    %109 = vector.load %arg8[%c0_62, %c0_63] : memref<256x128xbf16, #tpu.memory_space<vmem>>, vector<256x128xbf16>
    %cst_64 = arith.constant dense<0.000000e+00> : vector<128x128xf32>
    %110 = tpu.matmul %108, %109, %cst_64 {dimension_numbers = #tpu.dot_dimension_numbers<[1], [0], [0], [1], [0, 0, 1, 1], [], []>} : vector<128x256xbf16>, vector<256x128xbf16>, vector<128x128xf32> -> vector<128x128xf32>
    %c0_65 = arith.constant 0 : index
    %c0_66 = arith.constant 0 : index
    %111 = vector.load %arg9[%c0_65, %c0_66] : memref<1x128xf32, #tpu.memory_space<vmem>>, vector<1x128xf32>
    %112 = vector.broadcast %111 : vector<1x128xf32> to vector<128x128xf32>
    %113 = arith.addf %110, %112 : vector<128x128xf32>
    %cst_67 = arith.constant 0.000000e+00 : f32
    %114 = vector.broadcast %cst_67 : f32 to vector<128x128xf32>
    %115 = arith.maximumf %113, %114 : vector<128x128xf32>
    %116 = arith.truncf %115 : vector<128x128xf32> to vector<128x128xbf16>
    %c0_68 = arith.constant 0 : index
    %c0_69 = arith.constant 0 : index
    %117 = vector.load %arg10[%c0_68, %c0_69] : memref<128x128xbf16, #tpu.memory_space<vmem>>, vector<128x128xbf16>
    %cst_70 = arith.constant dense<0.000000e+00> : vector<128x128xf32>
    %118 = tpu.matmul %116, %117, %cst_70 {dimension_numbers = #tpu.dot_dimension_numbers<[1], [0], [0], [1], [0, 0, 1, 1], [], []>} : vector<128x128xbf16>, vector<128x128xbf16>, vector<128x128xf32> -> vector<128x128xf32>
    %c0_71 = arith.constant 0 : index
    %c0_72 = arith.constant 0 : index
    %119 = vector.load %arg11[%c0_71, %c0_72] : memref<1x128xf32, #tpu.memory_space<vmem>>, vector<1x128xf32>
    %120 = vector.broadcast %119 : vector<1x128xf32> to vector<128x128xf32>
    %121 = arith.addf %118, %120 : vector<128x128xf32>
    %cst_73 = arith.constant 0.000000e+00 : f32
    %122 = vector.broadcast %cst_73 : f32 to vector<128x128xf32>
    %123 = arith.maximumf %121, %122 : vector<128x128xf32>
    %124 = arith.truncf %123 : vector<128x128xf32> to vector<128x128xbf16>
    %c0_74 = arith.constant 0 : index
    %c0_75 = arith.constant 0 : index
    %125 = vector.load %arg12[%c0_74, %c0_75] : memref<8x128xbf16, #tpu.memory_space<vmem>>, vector<8x128xbf16>
    "tpu.trace_start"() <{level = 10 : i32, message = "od,ed->oe"}> : () -> ()
    %cst_76 = arith.constant dense<0.000000e+00> : vector<8x128xf32>
    %126 = tpu.matmul %125, %124, %cst_76 {dimension_numbers = #tpu.dot_dimension_numbers<[1], [1], [0], [0], [0, 0, 1, 0], [], []>} : vector<8x128xbf16>, vector<128x128xbf16>, vector<8x128xf32> -> vector<8x128xf32>
    "tpu.trace_stop"() : () -> ()
    %c0_77 = arith.constant 0 : index
    %c0_78 = arith.constant 0 : index
    %127 = vector.load %arg13[%c0_77, %c0_78] : memref<1x1xf32, #tpu.memory_space<vmem>>, vector<1x1xf32>
    %128 = vector.broadcast %127 : vector<1x1xf32> to vector<8x128xf32>
    %129 = arith.addf %126, %128 : vector<8x128xf32>
    %c0_79 = arith.constant 0 : index
    %c0_80 = arith.constant 0 : index
    %130 = vector.load %arg16[%c0_79, %c0_80] : memref<8x128xf32, #tpu.memory_space<vmem>>, vector<8x128xf32>
    tpu.vector_store %arg16[%c0_79, %c0_80], %129 {strides = array<i32>} : memref<8x128xf32, #tpu.memory_space<vmem>>, vector<8x128xf32>,
    return
  }
}

</mosaic_0001>

<llo_original>
// kernel: single_edge_model_forward.1
$region0: #{single_edge_model_forward.1}
  #allocation0 [shape = 'u32[]', space=smem, size = 0x4, offset = 0x4, fixed_abs, tag = 'smem constant byte address 0x4 - core index']
  #allocation1 [shape = 'u32[144,128]{1,0:T(1,128)}', space=vmem, size = 0x12000, scoped, tag = 'internal scratch']
  #allocation2 [shape = 'f32[1,1]{1,0:T(1,128)S(1)}', space=vmem, size = 0x200, scoped, tag = 'scoped memory for single_edge_model_forward.1']
  %s0 = inlined_call_operand.vmem [shape: bf16[24,16], index: 0, kind: input, shape index: {}]
  %s1 = inlined_call_operand.vmem [shape: bf16[16,24], index: 1, kind: input, shape index: {}]
  %s2 = inlined_call_operand.vmem [shape: bf16[16,128], index: 2, kind: input, shape index: {}]
  %s3 = inlined_call_operand.vmem [shape: bf16[24,128], index: 3, kind: input, shape index: {}]
  %s4 = inlined_call_operand.vmem [shape: bf16[3,128,256], index: 4, kind: input, shape index: {}]
  %s5 = inlined_call_operand.hbm [shape: bf16[3,128,256], index: 5, kind: input, shape index: {}]
  %s6 = inlined_call_operand.vmem [shape: f32[3,1,128], index: 6, kind: input, shape index: {}]
  %s7 = inlined_call_operand.hbm [shape: f32[3,1,128], index: 7, kind: input, shape index: {}]
  %s8 = inlined_call_operand.vmem [shape: bf16[256,128], index: 8, kind: input, shape index: {}]
  %s9 = inlined_call_operand.vmem [shape: f32[1,128], index: 9, kind: input, shape index: {}]
  %s10 = inlined_call_operand.hbm [shape: bf16[128,128], index: 10, kind: input, shape index: {}]
  %s11 = inlined_call_operand.vmem [shape: f32[1,128], index: 11, kind: input, shape index: {}]
  %s12 = inlined_call_operand.vmem [shape: bf16[8,128], index: 12, kind: input, shape index: {}]
  %s13 = inlined_call_operand.<no memory space> [shape: f32[1,1], index: 13, kind: input, shape index: {}]
  %s14 = inlined_call_operand.vmem [shape: s32[128,1], index: 14, kind: input, shape index: {}]
  %s15 = inlined_call_operand.vmem [shape: s32[128,1], index: 15, kind: input, shape index: {}]
  %s16 = inlined_call_operand.vmem [shape: f32[8,128], index: 16, kind: output, shape index: {}]
  %s17 = sld [smem:[#allocation0]]
  $region86: #{single_edge_model_forward.1} parent=0
    _
  %s19 = ssub.s32 1, %s17
  %s20 = scalar_select 0, %s19, %s17
  %v21 = vstv %s13
  %22 = vst [vmem:[#allocation2] sm:$0x1] %v21
  $region1: #{single_edge_model_forward.1} parent=0
    #allocation3 [shape = 'u8[196608]{0}', space=vmem, size = 0x30000, scoped, tag = 'input window, operand 5, single buffered']
    #allocation4 [shape = 's32[1]{0}', space=sflag, size = 0x4, scoped, tag = 'scoped memory for single_edge_model_forward.1']
    #allocation5 [shape = 'u8[1536]{0}', space=vmem, size = 0x800, scoped, tag = 'input window, operand 7, single buffered']
    #allocation6 [shape = 's32[1]{0}', space=sflag, size = 0x4, scoped, tag = 'scoped memory for single_edge_model_forward.1']
    #allocation7 [shape = 'u8[32768]{0}', space=vmem, size = 0x8000, scoped, tag = 'input window, operand 10, single buffered']
    %23 = vsyncpa [#allocation4], 0
    %24 = vsyncpa [#allocation6], 0
    // Predicated region
    $region2: #{single_edge_model_forward.1} parent=1 // pred_check
      _
    $region3: #{single_edge_model_forward.1} parent=1 // pred_check_branch
      %26 = sbr.rel (0) target = $region5
    $region4: #{single_edge_model_forward.1} parent=1 // pred_region
      _
    $region5: #{single_edge_model_forward.1} parent=1 // pred_fallthru
      _
    // Predicated region
    $region6: #{single_edge_model_forward.1} parent=1 // pred_check
      _
    $region7: #{single_edge_model_forward.1} parent=1 // pred_check_branch
      %28 = sbr.rel (0) target = $region9
    $region8: #{single_edge_model_forward.1} parent=1 // pred_region
      _
    $region9: #{single_edge_model_forward.1} parent=1 // pred_fallthru
      _
    // Predicated region
    $region10: #{single_edge_model_forward.1} parent=1 // pred_check
      _
    $region11: #{single_edge_model_forward.1} parent=1 // pred_check_branch
      %30 = sbr.rel (0) target = $region13
    $region12: #{single_edge_model_forward.1} parent=1 // pred_region
      _
    $region13: #{single_edge_model_forward.1} parent=1 // pred_fallthru
      _
    // Predicated region
    $region14: #{single_edge_model_forward.1} parent=1 // pred_check
      _
    $region15: #{single_edge_model_forward.1} parent=1 // pred_check_branch
      %32 = sbr.rel (0) target = $region17
    $region16: #{single_edge_model_forward.1} parent=1 // pred_region
      _
    $region17: #{single_edge_model_forward.1} parent=1 // pred_fallthru
      _
    // Predicated region
    $region18: #{single_edge_model_forward.1} parent=1 // pred_check
      _
    $region19: #{single_edge_model_forward.1} parent=1 // pred_check_branch
      %34 = sbr.rel (0) target = $region21
    $region20: #{single_edge_model_forward.1} parent=1 // pred_region
      _
    $region21: #{single_edge_model_forward.1} parent=1 // pred_fallthru
      _
    // Predicated region
    $region22: #{single_edge_model_forward.1} parent=1 // pred_check
      _
    $region23: #{single_edge_model_forward.1} parent=1 // pred_check_branch
      %36 = sbr.rel (0) target = $region25
    $region24: #{single_edge_model_forward.1} parent=1 // pred_region
      %s38 = ssub.s32 6144, 6144
      %39 = vsyncadd [#allocation4], %s38
      %s40 = sshll.u32 [#allocation3], 4
      %s41 = int_to_ptr.vmem [resolvable:$true] %s40
      %46 = dma.hbm_to_vmem [thread:$0]  %s5, 6144, %s41, [#allocation4], 128, 128, 8
    $region25: #{single_edge_model_forward.1} parent=1 // pred_fallthru
      _
    // Predicated region
    $region26: #{single_edge_model_forward.1} parent=1 // pred_check
      _
    $region27: #{single_edge_model_forward.1} parent=1 // pred_check_branch
      %48 = sbr.rel (0) target = $region29
    $region28: #{single_edge_model_forward.1} parent=1 // pred_region
      _
    $region29: #{single_edge_model_forward.1} parent=1 // pred_fallthru
      _
    // Predicated region
    $region30: #{single_edge_model_forward.1} parent=1 // pred_check
      _
    $region31: #{single_edge_model_forward.1} parent=1 // pred_check_branch
      %50 = sbr.rel (0) target = $region33
    $region32: #{single_edge_model_forward.1} parent=1 // pred_region
      %s52 = ssub.s32 48, 48
      %53 = vsyncadd [#allocation6], %s52
      %s54 = sshll.u32 [#allocation5], 4
      %s55 = int_to_ptr.vmem [resolvable:$true] %s54
      %60 = dma.hbm_to_vmem [thread:$0]  %s7, 48, %s55, [#allocation6], 16, 16, 1
    $region33: #{single_edge_model_forward.1} parent=1 // pred_fallthru
      _
    // Predicated region
    $region34: #{single_edge_model_forward.1} parent=1 // pred_check
      _
    $region35: #{single_edge_model_forward.1} parent=1 // pred_check_branch
      %62 = sbr.rel (0) target = $region37
    $region36: #{single_edge_model_forward.1} parent=1 // pred_region
      _
    $region37: #{single_edge_model_forward.1} parent=1 // pred_fallthru
      _
    // Predicated region
    $region38: #{single_edge_model_forward.1} parent=1 // pred_check
      _
    $region39: #{single_edge_model_forward.1} parent=1 // pred_check_branch
      %64 = sbr.rel (0) target = $region41
    $region40: #{single_edge_model_forward.1} parent=1 // pred_region
      _
    $region41: #{single_edge_model_forward.1} parent=1 // pred_fallthru
      _
    // Predicated region
    $region42: #{single_edge_model_forward.1} parent=1 // pred_check
      _
    $region43: #{single_edge_model_forward.1} parent=1 // pred_check_branch
      %66 = sbr.rel (0) target = $region45
    $region44: #{single_edge_model_forward.1} parent=1 // pred_region
      %s68 = ssub.s32 1024, 1024
      %69 = vsyncadd [#allocation6], %s68
      %s70 = sshll.u32 [#allocation7], 4
      %s71 = int_to_ptr.vmem [resolvable:$true] %s70
      %76 = dma.hbm_to_vmem [thread:$0]  %s10, 1024, %s71, [#allocation6], 64, 64, 4
    $region45: #{single_edge_model_forward.1} parent=1 // pred_fallthru
      _
    // Predicated region
    $region46: #{single_edge_model_forward.1} parent=1 // pred_check
      _
    $region47: #{single_edge_model_forward.1} parent=1 // pred_check_branch
      %78 = sbr.rel (0) target = $region49
    $region48: #{single_edge_model_forward.1} parent=1 // pred_region
      _
    $region49: #{single_edge_model_forward.1} parent=1 // pred_fallthru
      _
    // Predicated region
    $region50: #{single_edge_model_forward.1} parent=1 // pred_check
      _
    $region51: #{single_edge_model_forward.1} parent=1 // pred_check_branch
      %80 = sbr.rel (0) target = $region53
    $region52: #{single_edge_model_forward.1} parent=1 // pred_region
      _
    $region53: #{single_edge_model_forward.1} parent=1 // pred_fallthru
      _
    // Predicated region
    $region54: #{single_edge_model_forward.1} parent=1 // pred_check
      _
    $region55: #{single_edge_model_forward.1} parent=1 // pred_check_branch
      %82 = sbr.rel (0) target = $region57
    $region56: #{single_edge_model_forward.1} parent=1 // pred_region
      _
    $region57: #{single_edge_model_forward.1} parent=1 // pred_fallthru
      _
    // Predicated region
    $region58: #{single_edge_model_forward.1} parent=1 // pred_check
      _
    $region59: #{single_edge_model_forward.1} parent=1 // pred_check_branch
      %84 = sbr.rel (0) target = $region61
    $region60: #{single_edge_model_forward.1} parent=1 // pred_region
      _
    $region61: #{single_edge_model_forward.1} parent=1 // pred_fallthru
      _
    // Predicated region
    $region62: #{single_edge_model_forward.1} parent=1 // pred_check
      _
    $region63: #{single_edge_model_forward.1} parent=1 // pred_check_branch
      %86 = sbr.rel (0) target = $region65
    $region64: #{single_edge_model_forward.1} parent=1 // pred_region
      _
    $region65: #{single_edge_model_forward.1} parent=1 // pred_fallthru
      _
    // Predicated region
    $region66: #{single_edge_model_forward.1} parent=1 // pred_check
      _
    $region67: #{single_edge_model_forward.1} parent=1 // pred_check_branch
      %88 = sbr.rel (0) target = $region69
    $region68: #{single_edge_model_forward.1} parent=1 // pred_region
      %89 = dma.done [#allocation4], 6144
    $region69: #{single_edge_model_forward.1} parent=1 // pred_fallthru
      _
    // Predicated region
    $region70: #{single_edge_model_forward.1} parent=1 // pred_check
      _
    $region71: #{single_edge_model_forward.1} parent=1 // pred_check_branch
      %91 = sbr.rel (0) target = $region73
    $region72: #{single_edge_model_forward.1} parent=1 // pred_region
      %92 = dma.done [#allocation6], 48
    $region73: #{single_edge_model_forward.1} parent=1 // pred_fallthru
      _
    // Predicated region
    $region74: #{single_edge_model_forward.1} parent=1 // pred_check
      _
    $region75: #{single_edge_model_forward.1} parent=1 // pred_check_branch
      %94 = sbr.rel (0) target = $region77
    $region76: #{single_edge_model_forward.1} parent=1 // pred_region
      %95 = dma.done [#allocation6], 1024
    $region77: #{single_edge_model_forward.1} parent=1 // pred_fallthru
      _
    %v97 = vld [vmem:[%s0] sm:$0xf]
    %v98 = vld [vmem:[%s0 + $0x4] sm:$0xf]
    %v99 = vld [vmem:[%s0 + $0x8] sm:$0xf]
    %v100 = vld [vmem:[%s1] sm:$0xf]
    %v101 = vld [vmem:[%s1 + $0x4] sm:$0xf]
    %v102 = vld [vmem:[%s2] sm:$0xf]
    %v103 = vld [vmem:[%s2 + $0x4] sm:$0xf]
    %v104 = vld [vmem:[%s3] sm:$0xf]
    %v105 = vld [vmem:[%s3 + $0x4] sm:$0xf]
    %v106 = vld [vmem:[%s3 + $0x8] sm:$0xf]
    %v107 = vld [vmem:[%s4] sm:$0xff]
    %v108 = vld [vmem:[%s4 + $0x8] sm:$0xff]
    %v109 = vld [vmem:[%s4 + $0x10] sm:$0xff]
    %v110 = vld [vmem:[%s4 + $0x18] sm:$0xff]
    %v111 = vld [vmem:[%s4 + $0x20] sm:$0xff]
    %v112 = vld [vmem:[%s4 + $0x28] sm:$0xff]
    %v113 = vld [vmem:[%s4 + $0x30] sm:$0xff]
    %v114 = vld [vmem:[%s4 + $0x38] sm:$0xff]
    %v115 = vld [vmem:[%s4 + $0x40] sm:$0xff]
    %v116 = vld [vmem:[%s4 + $0x48] sm:$0xff]
    %v117 = vld [vmem:[%s4 + $0x50] sm:$0xff]
    %v118 = vld [vmem:[%s4 + $0x58] sm:$0xff]
    %v119 = vld [vmem:[%s4 + $0x60] sm:$0xff]
    %v120 = vld [vmem:[%s4 + $0x68] sm:$0xff]
    %v121 = vld [vmem:[%s4 + $0x70] sm:$0xff]
    %v122 = vld [vmem:[%s4 + $0x78] sm:$0xff]
    %v125 = vunpack.c.l.b16 %v102
    %v126 = vunpack.c.l.b16 %v103
    %v127 = vpack.c.b16 %v126, %v125
    %v145 = vunpack.c.l.b16 %v107
    %v146 = vunpack.c.h.b16 %v107
    %v147 = vunpack.c.l.b16 %v108
    %v148 = vunpack.c.h.b16 %v108
    %v149 = vunpack.c.l.b16 %v109
    %v150 = vunpack.c.h.b16 %v109
    %v151 = vunpack.c.l.b16 %v110
    %v152 = vunpack.c.h.b16 %v110
    %v153 = vunpack.c.l.b16 %v111
    %v154 = vunpack.c.h.b16 %v111
    %v155 = vunpack.c.l.b16 %v112
    %v156 = vunpack.c.h.b16 %v112
    %v157 = vunpack.c.l.b16 %v113
    %v158 = vunpack.c.h.b16 %v113
    %v159 = vunpack.c.l.b16 %v114
    %v160 = vunpack.c.h.b16 %v114
    %v161 = vunpack.c.l.b16 %v115
    %v162 = vunpack.c.h.b16 %v115
    %v163 = vunpack.c.l.b16 %v116
    %v164 = vunpack.c.h.b16 %v116
    %v165 = vunpack.c.l.b16 %v117
    %v166 = vunpack.c.h.b16 %v117
    %v167 = vunpack.c.l.b16 %v118
    %v168 = vunpack.c.h.b16 %v118
    %v169 = vunpack.c.l.b16 %v119
    %v170 = vunpack.c.h.b16 %v119
    %v171 = vunpack.c.l.b16 %v120
    %v172 = vunpack.c.h.b16 %v120
    %v173 = vunpack.c.l.b16 %v121
    %v174 = vunpack.c.h.b16 %v121
    %v175 = vunpack.c.l.b16 %v122
    %v176 = vunpack.c.h.b16 %v122
    %v177 = vpack.c.b16 %v147, %v145
    %v178 = vpack.c.b16 %v148, %v146
    %v179 = vpack.c.b16 %v151, %v149
    %v180 = vpack.c.b16 %v152, %v150
    %v181 = vpack.c.b16 %v155, %v153
    %v182 = vpack.c.b16 %v156, %v154
    %v183 = vpack.c.b16 %v159, %v157
    %v184 = vpack.c.b16 %v160, %v158
    %v185 = vpack.c.b16 %v163, %v161
    %v186 = vpack.c.b16 %v164, %v162
    %v187 = vpack.c.b16 %v167, %v165
    %v188 = vpack.c.b16 %v168, %v166
    %v189 = vpack.c.b16 %v171, %v169
    %v190 = vpack.c.b16 %v172, %v170
    %v191 = vpack.c.b16 %v175, %v173
    %v192 = vpack.c.b16 %v176, %v174
    %209 = vmatprep.subr.bf16.mxu0 %v178
    %210 = vmatpush1.bf16.msra.mxu0 %v177
    %211 = vmatprep.subr.bf16.mxu0 %v180
    %212 = vmatpush1.bf16.msra.mxu0 %v179
    %213 = vmatprep.subr.bf16.mxu0 %v182
    %214 = vmatpush1.bf16.msra.mxu0 %v181
    %215 = vmatprep.subr.bf16.mxu0 %v184
    %216 = vmatpush1.bf16.msra.mxu0 %v183
    %217 = vmatprep.subr.bf16.mxu0 %v186
    %218 = vmatpush1.bf16.msra.mxu0 %v185
    %219 = vmatprep.subr.bf16.mxu0 %v188
    %220 = vmatpush1.bf16.msra.mxu0 %v187
    %221 = vmatprep.subr.bf16.mxu0 %v190
    %222 = vmatpush1.bf16.msra.mxu0 %v189
    %223 = vmatprep.subr.bf16.mxu0 %v192
    %224 = vmatpush1.bf16.msra.mxu0 %v191
    %225 = vmatprep.subr.bf16.mxu0 0
    %226 = vmatpush1.bf16.msra.mxu0 0
    %227 = vmatprep.subr.bf16.mxu0 0
    %228 = vmatpush1.bf16.msra.mxu0 0
    %229 = vmatprep.subr.bf16.mxu0 0
    %230 = vmatpush1.bf16.msra.mxu0 0
    %231 = vmatprep.subr.bf16.mxu0 0
    %232 = vmatpush1.bf16.msra.mxu0 0
    %233 = vmatprep.subr.bf16.mxu0 0
    %234 = vmatpush1.bf16.msra.mxu0 0
    %235 = vmatprep.subr.bf16.mxu0 0
    %236 = vmatpush1.bf16.msra.mxu0 0
    %237 = vmatprep.subr.bf16.mxu0 0
    %238 = vmatpush1.bf16.msra.mxu0 0
    %239 = vmatprep.subr.bf16.mxu0 0
    %240 = vmatpush1.bf16.msra.mxu0 0
    %241 = vmatprep.mubr.bf16.mxu0 0
    %242 = vmatmul.mubr.bf16.gmra.mrb[0].mxu0 %v127
    %v243 = vpop.f32.mrb[0].mxu0
    %v244 = vadd.f32 0.0, %v243
    %v245 = vpop.f32.mrb[0].mxu0
    %v246 = vadd.f32 0.0, %v245
    %v247 = vpop.f32.mrb[0].mxu0
    %v248 = vadd.f32 0.0, %v247
    %v249 = vpop.f32.mrb[0].mxu0
    %v250 = vadd.f32 0.0, %v249
    %251 = vdwg.mxu0
    %v252 = vld [vmem:[#allocation3] sm:$0xff]
    %v253 = vld [vmem:[#allocation3 + $0x8] sm:$0xff]
    %v254 = vld [vmem:[#allocation3 + $0x10] sm:$0xff]
    %v255 = vld [vmem:[#allocation3 + $0x18] sm:$0xff]
    %v256 = vld [vmem:[#allocation3 + $0x20] sm:$0xff]
    %v257 = vld [vmem:[#allocation3 + $0x28] sm:$0xff]
    %v258 = vld [vmem:[#allocation3 + $0x30] sm:$0xff]
    %v259 = vld [vmem:[#allocation3 + $0x38] sm:$0xff]
    %v260 = vld [vmem:[#allocation3 + $0x40] sm:$0xff]
    %v261 = vld [vmem:[#allocation3 + $0x48] sm:$0xff]
    %v262 = vld [vmem:[#allocation3 + $0x50] sm:$0xff]
    %v263 = vld [vmem:[#allocation3 + $0x58] sm:$0xff]
    %v264 = vld [vmem:[#allocation3 + $0x60] sm:$0xff]
    %v265 = vld [vmem:[#allocation3 + $0x68] sm:$0xff]
    %v266 = vld [vmem:[#allocation3 + $0x70] sm:$0xff]
    %v267 = vld [vmem:[#allocation3 + $0x78] sm:$0xff]
    %v271 = vunpack.c.l.b16 %v104
    %v272 = vunpack.c.l.b16 %v105
    %v273 = vunpack.c.l.b16 %v106
    %v274 = vpack.c.b16 %v272, %v271
    %v275 = vpack.c.b16 %v273, %v273
    %v294 = vunpack.c.l.b16 %v252
    %v295 = vunpack.c.h.b16 %v252
    %v296 = vunpack.c.l.b16 %v253
    %v297 = vunpack.c.h.b16 %v253
    %v298 = vunpack.c.l.b16 %v254
    %v299 = vunpack.c.h.b16 %v254
    %v300 = vunpack.c.l.b16 %v255
    %v301 = vunpack.c.h.b16 %v255
    %v302 = vunpack.c.l.b16 %v256
    %v303 = vunpack.c.h.b16 %v256
    %v304 = vunpack.c.l.b16 %v257
    %v305 = vunpack.c.h.b16 %v257
    %v306 = vunpack.c.l.b16 %v258
    %v307 = vunpack.c.h.b16 %v258
    %v308 = vunpack.c.l.b16 %v259
    %v309 = vunpack.c.h.b16 %v259
    %v310 = vunpack.c.l.b16 %v260
    %v311 = vunpack.c.h.b16 %v260
    %v312 = vunpack.c.l.b16 %v261
    %v313 = vunpack.c.h.b16 %v261
    %v314 = vunpack.c.l.b16 %v262
    %v315 = vunpack.c.h.b16 %v262
    %v316 = vunpack.c.l.b16 %v263
    %v317 = vunpack.c.h.b16 %v263
    %v318 = vunpack.c.l.b16 %v264
    %v319 = vunpack.c.h.b16 %v264
    %v320 = vunpack.c.l.b16 %v265
    %v321 = vunpack.c.h.b16 %v265
    %v322 = vunpack.c.l.b16 %v266
    %v323 = vunpack.c.h.b16 %v266
    %v324 = vunpack.c.l.b16 %v267
    %v325 = vunpack.c.h.b16 %v267
    %v326 = vpack.c.b16 %v296, %v294
    %v327 = vpack.c.b16 %v297, %v295
    %v328 = vpack.c.b16 %v300, %v298
    %v329 = vpack.c.b16 %v301, %v299
    %v330 = vpack.c.b16 %v304, %v302
    %v331 = vpack.c.b16 %v305, %v303
    %v332 = vpack.c.b16 %v308, %v306
    %v333 = vpack.c.b16 %v309, %v307
    %v334 = vpack.c.b16 %v312, %v310
    %v335 = vpack.c.b16 %v313, %v311
    %v336 = vpack.c.b16 %v316, %v314
    %v337 = vpack.c.b16 %v317, %v315
    %v338 = vpack.c.b16 %v320, %v318
    %v339 = vpack.c.b16 %v321, %v319
    %v340 = vpack.c.b16 %v324, %v322
    %v341 = vpack.c.b16 %v325, %v323
    %358 = vmatprep.subr.bf16.mxu0 %v327
    %359 = vmatpush1.bf16.msra.mxu0 %v326
    %360 = vmatprep.subr.bf16.mxu0 %v329
    %361 = vmatpush1.bf16.msra.mxu0 %v328
    %362 = vmatprep.subr.bf16.mxu0 %v331
    %363 = vmatpush1.bf16.msra.mxu0 %v330
    %364 = vmatprep.subr.bf16.mxu0 %v333
    %365 = vmatpush1.bf16.msra.mxu0 %v332
    %366 = vmatprep.subr.bf16.mxu0 %v335
    %367 = vmatpush1.bf16.msra.mxu0 %v334
    %368 = vmatprep.subr.bf16.mxu0 %v337
    %369 = vmatpush1.bf16.msra.mxu0 %v336
    %370 = vmatprep.subr.bf16.mxu0 %v339
    %371 = vmatpush1.bf16.msra.mxu0 %v338
    %372 = vmatprep.subr.bf16.mxu0 %v341
    %373 = vmatpush1.bf16.msra.mxu0 %v340
    %374 = vmatprep.subr.bf16.mxu0 0
    %375 = vmatpush1.bf16.msra.mxu0 0
    %376 = vmatprep.subr.bf16.mxu0 0
    %377 = vmatpush1.bf16.msra.mxu0 0
    %378 = vmatprep.subr.bf16.mxu0 0
    %379 = vmatpush1.bf16.msra.mxu0 0
    %380 = vmatprep.subr.bf16.mxu0 0
    %381 = vmatpush1.bf16.msra.mxu0 0
    %382 = vmatprep.subr.bf16.mxu0 0
    %383 = vmatpush1.bf16.msra.mxu0 0
    %384 = vmatprep.subr.bf16.mxu0 0
    %385 = vmatpush1.bf16.msra.mxu0 0
    %386 = vmatprep.subr.bf16.mxu0 0
    %387 = vmatpush1.bf16.msra.mxu0 0
    %388 = vmatprep.subr.bf16.mxu0 0
    %389 = vmatpush1.bf16.msra.mxu0 0
    %390 = vmatprep.mubr.bf16.mxu0 0
    %391 = vmatmul.mubr.bf16.gmra.mrb[0].mxu0 %v274
    %v392 = vpop.f32.mrb[0].mxu0
    %v393 = vadd.f32 0.0, %v392
    %v394 = vpop.f32.mrb[0].mxu0
    %v395 = vadd.f32 0.0, %v394
    %v396 = vpop.f32.mrb[0].mxu0
    %v397 = vadd.f32 0.0, %v396
    %v398 = vpop.f32.mrb[0].mxu0
    %v399 = vadd.f32 0.0, %v398
    %400 = vmatprep.mubr.bf16.mxu0 0
    %401 = vmatmul.mubr.bf16.gmra.mrb[0].mxu0 %v275
    %v402 = vpop.f32.mrb[0].mxu0
    %v403 = vadd.f32 0.0, %v402
    %v404 = vpop.f32.mrb[0].mxu0
    %v405 = vadd.f32 0.0, %v404
    %v406 = vpop.f32.mrb[0].mxu0
    %v407 = vpop.f32.mrb[0].mxu0
    %408 = vdwg.mxu0
    %v409 = vpack.c.bf16 %v248, %v244
    %v410 = vpack.c.bf16 %v399, %v395
    %v411 = vpack.c.bf16 %v405, %v405
    %v415 = vunpack.c.l.b16 %v97
    %v416 = vunpack.c.l.b16 %v98
    %v417 = vunpack.c.l.b16 %v99
    %v418 = vpack.c.b16 %v416, %v415
    %v419 = vpack.c.b16 %v417, %v417
    %vm420 = vcmask 130048
    %v422 = vsel %vm420, %v418, 0
    %v425 = vsel %vm420, %v419, 0
    %427 = vmatprep.subr.bf16.mxu0 0
    %428 = vmatpush1.bf16.msra.mxu0 %v409
    %429 = vmatprep.subr.bf16.mxu0 0
    %430 = vmatpush1.bf16.msra.mxu0 0
    %431 = vmatprep.subr.bf16.mxu0 0
    %432 = vmatpush1.bf16.msra.mxu0 0
    %433 = vmatprep.subr.bf16.mxu0 0
    %434 = vmatpush1.bf16.msra.mxu0 0
    %435 = vmatprep.subr.bf16.mxu0 0
    %436 = vmatpush1.bf16.msra.mxu0 0
    %437 = vmatprep.subr.bf16.mxu0 0
    %438 = vmatpush1.bf16.msra.mxu0 0
    %439 = vmatprep.subr.bf16.mxu0 0
    %440 = vmatpush1.bf16.msra.mxu0 0
    %441 = vmatprep.subr.bf16.mxu0 0
    %442 = vmatpush1.bf16.msra.mxu0 0
    %443 = vmatprep.subr.bf16.mxu0 0
    %444 = vmatpush1.bf16.msra.mxu0 0
    %445 = vmatprep.subr.bf16.mxu0 0
    %446 = vmatpush1.bf16.msra.mxu0 0
    %447 = vmatprep.subr.bf16.mxu0 0
    %448 = vmatpush1.bf16.msra.mxu0 0
    %449 = vmatprep.subr.bf16.mxu0 0
    %450 = vmatpush1.bf16.msra.mxu0 0
    %451 = vmatprep.subr.bf16.mxu0 0
    %452 = vmatpush1.bf16.msra.mxu0 0
    %453 = vmatprep.subr.bf16.mxu0 0
    %454 = vmatpush1.bf16.msra.mxu0 0
    %455 = vmatprep.subr.bf16.mxu0 0
    %456 = vmatpush1.bf16.msra.mxu0 0
    %457 = vmatprep.subr.bf16.mxu0 0
    %458 = vmatpush1.bf16.msra.mxu0 0
    %459 = vmatprep.mubr.bf16.mxu0 0
    %460 = vmatmul.mubr.bf16.gmra.mrb[0].mxu0 %v422
    %v461 = vpop.f32.mrb[0].mxu0
    %v462 = vadd.f32 %v393, %v461
    %v463 = vpop.f32.mrb[0].mxu0
    %v464 = vpop.f32.mrb[0].mxu0
    %v465 = vadd.f32 %v397, %v464
    %v466 = vpop.f32.mrb[0].mxu0
    %467 = vmatprep.mubr.bf16.mxu0 0
    %468 = vmatmul.mubr.bf16.gmra.mrb[0].mxu0 %v425
    %v469 = vpop.f32.mrb[0].mxu0
    %v470 = vadd.f32 %v403, %v469
    %v471 = vpop.f32.mrb[0].mxu0
    %v472 = vpop.f32.mrb[0].mxu0
    %v473 = vpop.f32.mrb[0].mxu0
    %474 = vdwg.mxu0
    %v475 = vld [vmem:[%s6] sm:$0x1]
    %v477 = vlaneseq
    %v478 = vshrl.u32 %v477, 7
    %v479 = vsub.s32 0, %v478
    %v480 = vrot.slane %v475, %v479
    %v482 = vadd.f32 %v462, %v480
    %v483 = vadd.f32 %v465, %v480
    %v484 = vadd.f32 %v470, %v480
    %v487 = vunpack.c.l.b16 %v100
    %v488 = vunpack.c.l.b16 %v101
    %v489 = vpack.c.b16 %v488, %v487
    %vm490 = vcmask 195584
    %v492 = vsel %vm490, %v489, 0
    %vm494 = vcmask 1043456
    %v496 = vsel %vm494, %v411, 0
    %498 = vmatprep.subr.bf16.mxu0 0
    %499 = vmatpush1.bf16.msra.mxu0 %v410
    %500 = vmatprep.subr.bf16.mxu0 0
    %501 = vmatpush1.bf16.msra.mxu0 %v496
    %502 = vmatprep.subr.bf16.mxu0 0
    %503 = vmatpush1.bf16.msra.mxu0 0
    %504 = vmatprep.subr.bf16.mxu0 0
    %505 = vmatpush1.bf16.msra.mxu0 0
    %506 = vmatprep.subr.bf16.mxu0 0
    %507 = vmatpush1.bf16.msra.mxu0 0
    %508 = vmatprep.subr.bf16.mxu0 0
    %509 = vmatpush1.bf16.msra.mxu0 0
    %510 = vmatprep.subr.bf16.mxu0 0
    %511 = vmatpush1.bf16.msra.mxu0 0
    %512 = vmatprep.subr.bf16.mxu0 0
    %513 = vmatpush1.bf16.msra.mxu0 0
    %514 = vmatprep.subr.bf16.mxu0 0
    %515 = vmatpush1.bf16.msra.mxu0 0
    %516 = vmatprep.subr.bf16.mxu0 0
    %517 = vmatpush1.bf16.msra.mxu0 0
    %518 = vmatprep.subr.bf16.mxu0 0
    %519 = vmatpush1.bf16.msra.mxu0 0
    %520 = vmatprep.subr.bf16.mxu0 0
    %521 = vmatpush1.bf16.msra.mxu0 0
    %522 = vmatprep.subr.bf16.mxu0 0
    %523 = vmatpush1.bf16.msra.mxu0 0
    %524 = vmatprep.subr.bf16.mxu0 0
    %525 = vmatpush1.bf16.msra.mxu0 0
    %526 = vmatprep.subr.bf16.mxu0 0
    %527 = vmatpush1.bf16.msra.mxu0 0
    %528 = vmatprep.subr.bf16.mxu0 0
    %529 = vmatpush1.bf16.msra.mxu0 0
    %530 = vmatprep.mubr.bf16.mxu0 0
    %531 = vmatmul.mubr.bf16.gmra.mrb[0].mxu0 %v492
    %v532 = vpop.f32.mrb[0].mxu0
    %v533 = vadd.f32 %v246, %v532
    %v534 = vpop.f32.mrb[0].mxu0
    %v535 = vpop.f32.mrb[0].mxu0
    %v536 = vadd.f32 %v250, %v535
    %v537 = vpop.f32.mrb[0].mxu0
    %538 = vdwg.mxu0
    %v539 = vld [vmem:[#allocation5] sm:$0x1]
    %v541 = vlaneseq
    %v542 = vshrl.u32 %v541, 7
    %v543 = vsub.s32 0, %v542
    %v544 = vrot.slane %v539, %v543
    %v546 = vadd.f32 %v533, %v544
    %v547 = vadd.f32 %v536, %v544
    %v548 = vmax.f32 %v482, 0.0
    %v549 = vmax.f32 %v483, 0.0
    %v550 = vmax.f32 %v484, 0.0
    %v551 = vmax.f32 %v546, 0.0
    %v552 = vmax.f32 %v547, 0.0
    %v553 = vpack.c.bf16 %v549, %v548
    %v554 = vpack.c.bf16 %v550, %v550
    %v555 = vpack.c.bf16 %v552, %v551
    %s556 = scalar_lea.vmem %s4, 128
    %v557 = vld [vmem:[%s556] sm:$0xff]
    %v558 = vld [vmem:[%s556 + $0x8] sm:$0xff]
    %v559 = vld [vmem:[%s556 + $0x10] sm:$0xff]
    %v560 = vld [vmem:[%s556 + $0x18] sm:$0xff]
    %v561 = vld [vmem:[%s556 + $0x20] sm:$0xff]
    %v562 = vld [vmem:[%s556 + $0x28] sm:$0xff]
    %v563 = vld [vmem:[%s556 + $0x30] sm:$0xff]
    %v564 = vld [vmem:[%s556 + $0x38] sm:$0xff]
    %v565 = vld [vmem:[%s556 + $0x40] sm:$0xff]
    %v566 = vld [vmem:[%s556 + $0x48] sm:$0xff]
    %v567 = vld [vmem:[%s556 + $0x50] sm:$0xff]
    %v568 = vld [vmem:[%s556 + $0x58] sm:$0xff]
    %v569 = vld [vmem:[%s556 + $0x60] sm:$0xff]
    %v570 = vld [vmem:[%s556 + $0x68] sm:$0xff]
    %v571 = vld [vmem:[%s556 + $0x70] sm:$0xff]
    %v572 = vld [vmem:[%s556 + $0x78] sm:$0xff]
    %v589 = vunpack.c.l.b16 %v557
    %v590 = vunpack.c.h.b16 %v557
    %v591 = vunpack.c.l.b16 %v558
    %v592 = vunpack.c.h.b16 %v558
    %v593 = vunpack.c.l.b16 %v559
    %v594 = vunpack.c.h.b16 %v559
    %v595 = vunpack.c.l.b16 %v560
    %v596 = vunpack.c.h.b16 %v560
    %v597 = vunpack.c.l.b16 %v561
    %v598 = vunpack.c.h.b16 %v561
    %v599 = vunpack.c.l.b16 %v562
    %v600 = vunpack.c.h.b16 %v562
    %v601 = vunpack.c.l.b16 %v563
    %v602 = vunpack.c.h.b16 %v563
    %v603 = vunpack.c.l.b16 %v564
    %v604 = vunpack.c.h.b16 %v564
    %v605 = vunpack.c.l.b16 %v565
    %v606 = vunpack.c.h.b16 %v565
    %v607 = vunpack.c.l.b16 %v566
    %v608 = vunpack.c.h.b16 %v566
    %v609 = vunpack.c.l.b16 %v567
    %v610 = vunpack.c.h.b16 %v567
    %v611 = vunpack.c.l.b16 %v568
    %v612 = vunpack.c.h.b16 %v568
    %v613 = vunpack.c.l.b16 %v569
    %v614 = vunpack.c.h.b16 %v569
    %v615 = vunpack.c.l.b16 %v570
    %v616 = vunpack.c.h.b16 %v570
    %v617 = vunpack.c.l.b16 %v571
    %v618 = vunpack.c.h.b16 %v571
    %v619 = vunpack.c.l.b16 %v572
    %v620 = vunpack.c.h.b16 %v572
    %v621 = vpack.c.b16 %v591, %v589
    %v622 = vpack.c.b16 %v592, %v590
    %v623 = vpack.c.b16 %v595, %v593
    %v624 = vpack.c.b16 %v596, %v594
    %v625 = vpack.c.b16 %v599, %v597
    %v626 = vpack.c.b16 %v600, %v598
    %v627 = vpack.c.b16 %v603, %v601
    %v628 = vpack.c.b16 %v604, %v602
    %v629 = vpack.c.b16 %v607, %v605
    %v630 = vpack.c.b16 %v608, %v606
    %v631 = vpack.c.b16 %v611, %v609
    %v632 = vpack.c.b16 %v612, %v610
    %v633 = vpack.c.b16 %v615, %v613
    %v634 = vpack.c.b16 %v616, %v614
    %v635 = vpack.c.b16 %v619, %v617
    %v636 = vpack.c.b16 %v620, %v618
    %653 = vmatprep.subr.bf16.mxu0 %v622
    %654 = vmatpush1.bf16.msra.mxu0 %v621
    %655 = vmatprep.subr.bf16.mxu0 %v624
    %656 = vmatpush1.bf16.msra.mxu0 %v623
    %657 = vmatprep.subr.bf16.mxu0 %v626
    %658 = vmatpush1.bf16.msra.mxu0 %v625
    %659 = vmatprep.subr.bf16.mxu0 %v628
    %660 = vmatpush1.bf16.msra.mxu0 %v627
    %661 = vmatprep.subr.bf16.mxu0 %v630
    %662 = vmatpush1.bf16.msra.mxu0 %v629
    %663 = vmatprep.subr.bf16.mxu0 %v632
    %664 = vmatpush1.bf16.msra.mxu0 %v631
    %665 = vmatprep.subr.bf16.mxu0 %v634
    %666 = vmatpush1.bf16.msra.mxu0 %v633
    %667 = vmatprep.subr.bf16.mxu0 %v636
    %668 = vmatpush1.bf16.msra.mxu0 %v635
    %669 = vmatprep.subr.bf16.mxu0 0
    %670 = vmatpush1.bf16.msra.mxu0 0
    %671 = vmatprep.subr.bf16.mxu0 0
    %672 = vmatpush1.bf16.msra.mxu0 0
    %673 = vmatprep.subr.bf16.mxu0 0
    %674 = vmatpush1.bf16.msra.mxu0 0
    %675 = vmatprep.subr.bf16.mxu0 0
    %676 = vmatpush1.bf16.msra.mxu0 0
    %677 = vmatprep.subr.bf16.mxu0 0
    %678 = vmatpush1.bf16.msra.mxu0 0
    %679 = vmatprep.subr.bf16.mxu0 0
    %680 = vmatpush1.bf16.msra.mxu0 0
    %681 = vmatprep.subr.bf16.mxu0 0
    %682 = vmatpush1.bf16.msra.mxu0 0
    %683 = vmatprep.subr.bf16.mxu0 0
    %684 = vmatpush1.bf16.msra.mxu0 0
    %685 = vmatprep.mubr.bf16.mxu0 0
    %686 = vmatmul.mubr.bf16.gmra.mrb[0].mxu0 %v555
    %v687 = vpop.f32.mrb[0].mxu0
    %v688 = vadd.f32 0.0, %v687
    %v689 = vpop.f32.mrb[0].mxu0
    %v690 = vadd.f32 0.0, %v689
    %v691 = vpop.f32.mrb[0].mxu0
    %v692 = vadd.f32 0.0, %v691
    %v693 = vpop.f32.mrb[0].mxu0
    %v694 = vadd.f32 0.0, %v693
    %695 = vdwg.mxu0
    %s696 = scalar_lea.vmem [#allocation3], 128
    %v697 = vld [vmem:[%s696] sm:$0xff]
    %v698 = vld [vmem:[%s696 + $0x8] sm:$0xff]
    %v699 = vld [vmem:[%s696 + $0x10] sm:$0xff]
    %v700 = vld [vmem:[%s696 + $0x18] sm:$0xff]
    %v701 = vld [vmem:[%s696 + $0x20] sm:$0xff]
    %v702 = vld [vmem:[%s696 + $0x28] sm:$0xff]
    %v703 = vld [vmem:[%s696 + $0x30] sm:$0xff]
    %v704 = vld [vmem:[%s696 + $0x38] sm:$0xff]
    %v705 = vld [vmem:[%s696 + $0x40] sm:$0xff]
    %v706 = vld [vmem:[%s696 + $0x48] sm:$0xff]
    %v707 = vld [vmem:[%s696 + $0x50] sm:$0xff]
    %v708 = vld [vmem:[%s696 + $0x58] sm:$0xff]
    %v709 = vld [vmem:[%s696 + $0x60] sm:$0xff]
    %v710 = vld [vmem:[%s696 + $0x68] sm:$0xff]
    %v711 = vld [vmem:[%s696 + $0x70] sm:$0xff]
    %v712 = vld [vmem:[%s696 + $0x78] sm:$0xff]
    %v729 = vunpack.c.l.b16 %v697
    %v730 = vunpack.c.h.b16 %v697
    %v731 = vunpack.c.l.b16 %v698
    %v732 = vunpack.c.h.b16 %v698
    %v733 = vunpack.c.l.b16 %v699
    %v734 = vunpack.c.h.b16 %v699
    %v735 = vunpack.c.l.b16 %v700
    %v736 = vunpack.c.h.b16 %v700
    %v737 = vunpack.c.l.b16 %v701
    %v738 = vunpack.c.h.b16 %v701
    %v739 = vunpack.c.l.b16 %v702
    %v740 = vunpack.c.h.b16 %v702
    %v741 = vunpack.c.l.b16 %v703
    %v742 = vunpack.c.h.b16 %v703
    %v743 = vunpack.c.l.b16 %v704
    %v744 = vunpack.c.h.b16 %v704
    %v745 = vunpack.c.l.b16 %v705
    %v746 = vunpack.c.h.b16 %v705
    %v747 = vunpack.c.l.b16 %v706
    %v748 = vunpack.c.h.b16 %v706
    %v749 = vunpack.c.l.b16 %v707
    %v750 = vunpack.c.h.b16 %v707
    %v751 = vunpack.c.l.b16 %v708
    %v752 = vunpack.c.h.b16 %v708
    %v753 = vunpack.c.l.b16 %v709
    %v754 = vunpack.c.h.b16 %v709
    %v755 = vunpack.c.l.b16 %v710
    %v756 = vunpack.c.h.b16 %v710
    %v757 = vunpack.c.l.b16 %v711
    %v758 = vunpack.c.h.b16 %v711
    %v759 = vunpack.c.l.b16 %v712
    %v760 = vunpack.c.h.b16 %v712
    %v761 = vpack.c.b16 %v731, %v729
    %v762 = vpack.c.b16 %v732, %v730
    %v763 = vpack.c.b16 %v735, %v733
    %v764 = vpack.c.b16 %v736, %v734
    %v765 = vpack.c.b16 %v739, %v737
    %v766 = vpack.c.b16 %v740, %v738
    %v767 = vpack.c.b16 %v743, %v741
    %v768 = vpack.c.b16 %v744, %v742
    %v769 = vpack.c.b16 %v747, %v745
    %v770 = vpack.c.b16 %v748, %v746
    %v771 = vpack.c.b16 %v751, %v749
    %v772 = vpack.c.b16 %v752, %v750
    %v773 = vpack.c.b16 %v755, %v753
    %v774 = vpack.c.b16 %v756, %v754
    %v775 = vpack.c.b16 %v759, %v757
    %v776 = vpack.c.b16 %v760, %v758
    %793 = vmatprep.subr.bf16.mxu0 %v762
    %794 = vmatpush1.bf16.msra.mxu0 %v761
    %795 = vmatprep.subr.bf16.mxu0 %v764
    %796 = vmatpush1.bf16.msra.mxu0 %v763
    %797 = vmatprep.subr.bf16.mxu0 %v766
    %798 = vmatpush1.bf16.msra.mxu0 %v765
    %799 = vmatprep.subr.bf16.mxu0 %v768
    %800 = vmatpush1.bf16.msra.mxu0 %v767
    %801 = vmatprep.subr.bf16.mxu0 %v770
    %802 = vmatpush1.bf16.msra.mxu0 %v769
    %803 = vmatprep.subr.bf16.mxu0 %v772
    %804 = vmatpush1.bf16.msra.mxu0 %v771
    %805 = vmatprep.subr.bf16.mxu0 %v774
    %806 = vmatpush1.bf16.msra.mxu0 %v773
    %807 = vmatprep.subr.bf16.mxu0 %v776
    %808 = vmatpush1.bf16.msra.mxu0 %v775
    %809 = vmatprep.subr.bf16.mxu0 0
    %810 = vmatpush1.bf16.msra.mxu0 0
    %811 = vmatprep.subr.bf16.mxu0 0
    %812 = vmatpush1.bf16.msra.mxu0 0
    %813 = vmatprep.subr.bf16.mxu0 0
    %814 = vmatpush1.bf16.msra.mxu0 0
    %815 = vmatprep.subr.bf16.mxu0 0
    %816 = vmatpush1.bf16.msra.mxu0 0
    %817 = vmatprep.subr.bf16.mxu0 0
    %818 = vmatpush1.bf16.msra.mxu0 0
    %819 = vmatprep.subr.bf16.mxu0 0
    %820 = vmatpush1.bf16.msra.mxu0 0
    %821 = vmatprep.subr.bf16.mxu0 0
    %822 = vmatpush1.bf16.msra.mxu0 0
    %823 = vmatprep.subr.bf16.mxu0 0
    %824 = vmatpush1.bf16.msra.mxu0 0
    %825 = vmatprep.mubr.bf16.mxu0 0
    %826 = vmatmul.mubr.bf16.gmra.mrb[0].mxu0 %v553
    %v827 = vpop.f32.mrb[0].mxu0
    %v828 = vadd.f32 0.0, %v827
    %v829 = vpop.f32.mrb[0].mxu0
    %v830 = vadd.f32 0.0, %v829
    %v831 = vpop.f32.mrb[0].mxu0
    %v832 = vadd.f32 0.0, %v831
    %v833 = vpop.f32.mrb[0].mxu0
    %v834 = vadd.f32 0.0, %v833
    %835 = vmatprep.mubr.bf16.mxu0 0
    %836 = vmatmul.mubr.bf16.gmra.mrb[0].mxu0 %v554
    %v837 = vpop.f32.mrb[0].mxu0
    %v838 = vadd.f32 0.0, %v837
    %v839 = vpop.f32.mrb[0].mxu0
    %v840 = vadd.f32 0.0, %v839
    %v841 = vpop.f32.mrb[0].mxu0
    %v842 = vpop.f32.mrb[0].mxu0
    %843 = vdwg.mxu0
    %v844 = vpack.c.bf16 %v692, %v688
    %v845 = vpack.c.bf16 %v834, %v830
    %v846 = vpack.c.bf16 %v840, %v840
    %847 = vmatprep.subr.bf16.mxu0 0
    %848 = vmatpush1.bf16.msra.mxu0 %v844
    %849 = vmatprep.subr.bf16.mxu0 0
    %850 = vmatpush1.bf16.msra.mxu0 0
    %851 = vmatprep.subr.bf16.mxu0 0
    %852 = vmatpush1.bf16.msra.mxu0 0
    %853 = vmatprep.subr.bf16.mxu0 0
    %854 = vmatpush1.bf16.msra.mxu0 0
    %855 = vmatprep.subr.bf16.mxu0 0
    %856 = vmatpush1.bf16.msra.mxu0 0
    %857 = vmatprep.subr.bf16.mxu0 0
    %858 = vmatpush1.bf16.msra.mxu0 0
    %859 = vmatprep.subr.bf16.mxu0 0
    %860 = vmatpush1.bf16.msra.mxu0 0
    %861 = vmatprep.subr.bf16.mxu0 0
    %862 = vmatpush1.bf16.msra.mxu0 0
    %863 = vmatprep.subr.bf16.mxu0 0
    %864 = vmatpush1.bf16.msra.mxu0 0
    %865 = vmatprep.subr.bf16.mxu0 0
    %866 = vmatpush1.bf16.msra.mxu0 0
    %867 = vmatprep.subr.bf16.mxu0 0
    %868 = vmatpush1.bf16.msra.mxu0 0
    %869 = vmatprep.subr.bf16.mxu0 0
    %870 = vmatpush1.bf16.msra.mxu0 0
    %871 = vmatprep.subr.bf16.mxu0 0
    %872 = vmatpush1.bf16.msra.mxu0 0
    %873 = vmatprep.subr.bf16.mxu0 0
    %874 = vmatpush1.bf16.msra.mxu0 0
    %875 = vmatprep.subr.bf16.mxu0 0
    %876 = vmatpush1.bf16.msra.mxu0 0
    %877 = vmatprep.subr.bf16.mxu0 0
    %878 = vmatpush1.bf16.msra.mxu0 0
    %879 = vmatprep.mubr.bf16.mxu0 0
    %880 = vmatmul.mubr.bf16.gmra.mrb[0].mxu0 %v422
    %v881 = vpop.f32.mrb[0].mxu0
    %v882 = vadd.f32 %v828, %v881
    %v883 = vpop.f32.mrb[0].mxu0
    %v884 = vpop.f32.mrb[0].mxu0
    %v885 = vadd.f32 %v832, %v884
    %v886 = vpop.f32.mrb[0].mxu0
    %887 = vmatprep.mubr.bf16.mxu0 0
    %888 = vmatmul.mubr.bf16.gmra.mrb[0].mxu0 %v425
    %v889 = vpop.f32.mrb[0].mxu0
    %v890 = vadd.f32 %v838, %v889
    %v891 = vpop.f32.mrb[0].mxu0
    %v892 = vpop.f32.mrb[0].mxu0
    %v893 = vpop.f32.mrb[0].mxu0
    %894 = vdwg.mxu0
    %s895 = scalar_lea.vmem %s6, 1
    %v896 = vld [vmem:[%s895] sm:$0x1]
    %v898 = vlaneseq
    %v899 = vshrl.u32 %v898, 7
    %v900 = vsub.s32 0, %v899
    %v901 = vrot.slane %v896, %v900
    %v903 = vadd.f32 %v882, %v901
    %v904 = vadd.f32 %v885, %v901
    %v905 = vadd.f32 %v890, %v901
    %v907 = vsel %vm494, %v846, 0
    %909 = vmatprep.subr.bf16.mxu0 0
    %910 = vmatpush1.bf16.msra.mxu0 %v845
    %911 = vmatprep.subr.bf16.mxu0 0
    %912 = vmatpush1.bf16.msra.mxu0 %v907
    %913 = vmatprep.subr.bf16.mxu0 0
    %914 = vmatpush1.bf16.msra.mxu0 0
    %915 = vmatprep.subr.bf16.mxu0 0
    %916 = vmatpush1.bf16.msra.mxu0 0
    %917 = vmatprep.subr.bf16.mxu0 0
    %918 = vmatpush1.bf16.msra.mxu0 0
    %919 = vmatprep.subr.bf16.mxu0 0
    %920 = vmatpush1.bf16.msra.mxu0 0
    %921 = vmatprep.subr.bf16.mxu0 0
    %922 = vmatpush1.bf16.msra.mxu0 0
    %923 = vmatprep.subr.bf16.mxu0 0
    %924 = vmatpush1.bf16.msra.mxu0 0
    %925 = vmatprep.subr.bf16.mxu0 0
    %926 = vmatpush1.bf16.msra.mxu0 0
    %927 = vmatprep.subr.bf16.mxu0 0
    %928 = vmatpush1.bf16.msra.mxu0 0
    %929 = vmatprep.subr.bf16.mxu0 0
    %930 = vmatpush1.bf16.msra.mxu0 0
    %931 = vmatprep.subr.bf16.mxu0 0
    %932 = vmatpush1.bf16.msra.mxu0 0
    %933 = vmatprep.subr.bf16.mxu0 0
    %934 = vmatpush1.bf16.msra.mxu0 0
    %935 = vmatprep.subr.bf16.mxu0 0
    %936 = vmatpush1.bf16.msra.mxu0 0
    %937 = vmatprep.subr.bf16.mxu0 0
    %938 = vmatpush1.bf16.msra.mxu0 0
    %939 = vmatprep.subr.bf16.mxu0 0
    %940 = vmatpush1.bf16.msra.mxu0 0
    %941 = vmatprep.mubr.bf16.mxu0 0
    %942 = vmatmul.mubr.bf16.gmra.mrb[0].mxu0 %v492
    %v943 = vpop.f32.mrb[0].mxu0
    %v944 = vadd.f32 %v690, %v943
    %v945 = vpop.f32.mrb[0].mxu0
    %v946 = vpop.f32.mrb[0].mxu0
    %v947 = vadd.f32 %v694, %v946
    %v948 = vpop.f32.mrb[0].mxu0
    %949 = vdwg.mxu0
    %s950 = scalar_lea.vmem [#allocation5], 1
    %v951 = vld [vmem:[%s950] sm:$0x1]
    %v953 = vlaneseq
    %v954 = vshrl.u32 %v953, 7
    %v955 = vsub.s32 0, %v954
    %v956 = vrot.slane %v951, %v955
    %v958 = vadd.f32 %v944, %v956
    %v959 = vadd.f32 %v947, %v956
    %v960 = vmax.f32 %v903, 0.0
    %v961 = vmax.f32 %v904, 0.0
    %v962 = vmax.f32 %v905, 0.0
    %v963 = vmax.f32 %v958, 0.0
    %v964 = vmax.f32 %v959, 0.0
    %v965 = vpack.c.bf16 %v961, %v960
    %v966 = vpack.c.bf16 %v962, %v962
    %v967 = vpack.c.bf16 %v964, %v963
    %s968 = scalar_lea.vmem %s4, 256
    %v969 = vld [vmem:[%s968] sm:$0xff]
    %v970 = vld [vmem:[%s968 + $0x8] sm:$0xff]
    %v971 = vld [vmem:[%s968 + $0x10] sm:$0xff]
    %v972 = vld [vmem:[%s968 + $0x18] sm:$0xff]
    %v973 = vld [vmem:[%s968 + $0x20] sm:$0xff]
    %v974 = vld [vmem:[%s968 + $0x28] sm:$0xff]
    %v975 = vld [vmem:[%s968 + $0x30] sm:$0xff]
    %v976 = vld [vmem:[%s968 + $0x38] sm:$0xff]
    %v977 = vld [vmem:[%s968 + $0x40] sm:$0xff]
    %v978 = vld [vmem:[%s968 + $0x48] sm:$0xff]
    %v979 = vld [vmem:[%s968 + $0x50] sm:$0xff]
    %v980 = vld [vmem:[%s968 + $0x58] sm:$0xff]
    %v981 = vld [vmem:[%s968 + $0x60] sm:$0xff]
    %v982 = vld [vmem:[%s968 + $0x68] sm:$0xff]
    %v983 = vld [vmem:[%s968 + $0x70] sm:$0xff]
    %v984 = vld [vmem:[%s968 + $0x78] sm:$0xff]
    %v1001 = vunpack.c.l.b16 %v969
    %v1002 = vunpack.c.h.b16 %v969
    %v1003 = vunpack.c.l.b16 %v970
    %v1004 = vunpack.c.h.b16 %v970
    %v1005 = vunpack.c.l.b16 %v971
    %v1006 = vunpack.c.h.b16 %v971
    %v1007 = vunpack.c.l.b16 %v972
    %v1008 = vunpack.c.h.b16 %v972
    %v1009 = vunpack.c.l.b16 %v973
    %v1010 = vunpack.c.h.b16 %v973
    %v1011 = vunpack.c.l.b16 %v974
    %v1012 = vunpack.c.h.b16 %v974
    %v1013 = vunpack.c.l.b16 %v975
    %v1014 = vunpack.c.h.b16 %v975
    %v1015 = vunpack.c.l.b16 %v976
    %v1016 = vunpack.c.h.b16 %v976
    %v1017 = vunpack.c.l.b16 %v977
    %v1018 = vunpack.c.h.b16 %v977
    %v1019 = vunpack.c.l.b16 %v978
    %v1020 = vunpack.c.h.b16 %v978
    %v1021 = vunpack.c.l.b16 %v979
    %v1022 = vunpack.c.h.b16 %v979
    %v1023 = vunpack.c.l.b16 %v980
    %v1024 = vunpack.c.h.b16 %v980
    %v1025 = vunpack.c.l.b16 %v981
    %v1026 = vunpack.c.h.b16 %v981
    %v1027 = vunpack.c.l.b16 %v982
    %v1028 = vunpack.c.h.b16 %v982
    %v1029 = vunpack.c.l.b16 %v983
    %v1030 = vunpack.c.h.b16 %v983
    %v1031 = vunpack.c.l.b16 %v984
    %v1032 = vunpack.c.h.b16 %v984
    %v1033 = vpack.c.b16 %v1003, %v1001
    %v1034 = vpack.c.b16 %v1004, %v1002
    %v1035 = vpack.c.b16 %v1007, %v1005
    %v1036 = vpack.c.b16 %v1008, %v1006
    %v1037 = vpack.c.b16 %v1011, %v1009
    %v1038 = vpack.c.b16 %v1012, %v1010
    %v1039 = vpack.c.b16 %v1015, %v1013
    %v1040 = vpack.c.b16 %v1016, %v1014
    %v1041 = vpack.c.b16 %v1019, %v1017
    %v1042 = vpack.c.b16 %v1020, %v1018
    %v1043 = vpack.c.b16 %v1023, %v1021
    %v1044 = vpack.c.b16 %v1024, %v1022
    %v1045 = vpack.c.b16 %v1027, %v1025
    %v1046 = vpack.c.b16 %v1028, %v1026
    %v1047 = vpack.c.b16 %v1031, %v1029
    %v1048 = vpack.c.b16 %v1032, %v1030
    %1065 = vmatprep.subr.bf16.mxu0 %v1034
    %1066 = vmatpush1.bf16.msra.mxu0 %v1033
    %1067 = vmatprep.subr.bf16.mxu0 %v1036
    %1068 = vmatpush1.bf16.msra.mxu0 %v1035
    %1069 = vmatprep.subr.bf16.mxu0 %v1038
    %1070 = vmatpush1.bf16.msra.mxu0 %v1037
    %1071 = vmatprep.subr.bf16.mxu0 %v1040
    %1072 = vmatpush1.bf16.msra.mxu0 %v1039
    %1073 = vmatprep.subr.bf16.mxu0 %v1042
    %1074 = vmatpush1.bf16.msra.mxu0 %v1041
    %1075 = vmatprep.subr.bf16.mxu0 %v1044
    %1076 = vmatpush1.bf16.msra.mxu0 %v1043
    %1077 = vmatprep.subr.bf16.mxu0 %v1046
    %1078 = vmatpush1.bf16.msra.mxu0 %v1045
    %1079 = vmatprep.subr.bf16.mxu0 %v1048
    %1080 = vmatpush1.bf16.msra.mxu0 %v1047
    %1081 = vmatprep.subr.bf16.mxu0 0
    %1082 = vmatpush1.bf16.msra.mxu0 0
    %1083 = vmatprep.subr.bf16.mxu0 0
    %1084 = vmatpush1.bf16.msra.mxu0 0
    %1085 = vmatprep.subr.bf16.mxu0 0
    %1086 = vmatpush1.bf16.msra.mxu0 0
    %1087 = vmatprep.subr.bf16.mxu0 0
    %1088 = vmatpush1.bf16.msra.mxu0 0
    %1089 = vmatprep.subr.bf16.mxu0 0
    %1090 = vmatpush1.bf16.msra.mxu0 0
    %1091 = vmatprep.subr.bf16.mxu0 0
    %1092 = vmatpush1.bf16.msra.mxu0 0
    %1093 = vmatprep.subr.bf16.mxu0 0
    %1094 = vmatpush1.bf16.msra.mxu0 0
    %1095 = vmatprep.subr.bf16.mxu0 0
    %1096 = vmatpush1.bf16.msra.mxu0 0
    %1097 = vmatprep.mubr.bf16.mxu0 0
    %1098 = vmatmul.mubr.bf16.gmra.mrb[0].mxu0 %v967
    %v1099 = vpop.f32.mrb[0].mxu0
    %v1100 = vadd.f32 0.0, %v1099
    %v1101 = vpop.f32.mrb[0].mxu0
    %v1102 = vadd.f32 0.0, %v1101
    %v1103 = vpop.f32.mrb[0].mxu0
    %v1104 = vadd.f32 0.0, %v1103
    %v1105 = vpop.f32.mrb[0].mxu0
    %v1106 = vadd.f32 0.0, %v1105
    %1107 = vdwg.mxu0
    %s1108 = scalar_lea.vmem [#allocation3], 256
    %v1109 = vld [vmem:[%s1108] sm:$0xff]
    %v1110 = vld [vmem:[%s1108 + $0x8] sm:$0xff]
    %v1111 = vld [vmem:[%s1108 + $0x10] sm:$0xff]
    %v1112 = vld [vmem:[%s1108 + $0x18] sm:$0xff]
    %v1113 = vld [vmem:[%s1108 + $0x20] sm:$0xff]
    %v1114 = vld [vmem:[%s1108 + $0x28] sm:$0xff]
    %v1115 = vld [vmem:[%s1108 + $0x30] sm:$0xff]
    %v1116 = vld [vmem:[%s1108 + $0x38] sm:$0xff]
    %v1117 = vld [vmem:[%s1108 + $0x40] sm:$0xff]
    %v1118 = vld [vmem:[%s1108 + $0x48] sm:$0xff]
    %v1119 = vld [vmem:[%s1108 + $0x50] sm:$0xff]
    %v1120 = vld [vmem:[%s1108 + $0x58] sm:$0xff]
    %v1121 = vld [vmem:[%s1108 + $0x60] sm:$0xff]
    %v1122 = vld [vmem:[%s1108 + $0x68] sm:$0xff]
    %v1123 = vld [vmem:[%s1108 + $0x70] sm:$0xff]
    %v1124 = vld [vmem:[%s1108 + $0x78] sm:$0xff]
    %v1141 = vunpack.c.l.b16 %v1109
    %v1142 = vunpack.c.h.b16 %v1109
    %v1143 = vunpack.c.l.b16 %v1110
    %v1144 = vunpack.c.h.b16 %v1110
    %v1145 = vunpack.c.l.b16 %v1111
    %v1146 = vunpack.c.h.b16 %v1111
    %v1147 = vunpack.c.l.b16 %v1112
    %v1148 = vunpack.c.h.b16 %v1112
    %v1149 = vunpack.c.l.b16 %v1113
    %v1150 = vunpack.c.h.b16 %v1113
    %v1151 = vunpack.c.l.b16 %v1114
    %v1152 = vunpack.c.h.b16 %v1114
    %v1153 = vunpack.c.l.b16 %v1115
    %v1154 = vunpack.c.h.b16 %v1115
    %v1155 = vunpack.c.l.b16 %v1116
    %v1156 = vunpack.c.h.b16 %v1116
    %v1157 = vunpack.c.l.b16 %v1117
    %v1158 = vunpack.c.h.b16 %v1117
    %v1159 = vunpack.c.l.b16 %v1118
    %v1160 = vunpack.c.h.b16 %v1118
    %v1161 = vunpack.c.l.b16 %v1119
    %v1162 = vunpack.c.h.b16 %v1119
    %v1163 = vunpack.c.l.b16 %v1120
    %v1164 = vunpack.c.h.b16 %v1120
    %v1165 = vunpack.c.l.b16 %v1121
    %v1166 = vunpack.c.h.b16 %v1121
    %v1167 = vunpack.c.l.b16 %v1122
    %v1168 = vunpack.c.h.b16 %v1122
    %v1169 = vunpack.c.l.b16 %v1123
    %v1170 = vunpack.c.h.b16 %v1123
    %v1171 = vunpack.c.l.b16 %v1124
    %v1172 = vunpack.c.h.b16 %v1124
    %v1173 = vpack.c.b16 %v1143, %v1141
    %v1174 = vpack.c.b16 %v1144, %v1142
    %v1175 = vpack.c.b16 %v1147, %v1145
    %v1176 = vpack.c.b16 %v1148, %v1146
    %v1177 = vpack.c.b16 %v1151, %v1149
    %v1178 = vpack.c.b16 %v1152, %v1150
    %v1179 = vpack.c.b16 %v1155, %v1153
    %v1180 = vpack.c.b16 %v1156, %v1154
    %v1181 = vpack.c.b16 %v1159, %v1157
    %v1182 = vpack.c.b16 %v1160, %v1158
    %v1183 = vpack.c.b16 %v1163, %v1161
    %v1184 = vpack.c.b16 %v1164, %v1162
    %v1185 = vpack.c.b16 %v1167, %v1165
    %v1186 = vpack.c.b16 %v1168, %v1166
    %v1187 = vpack.c.b16 %v1171, %v1169
    %v1188 = vpack.c.b16 %v1172, %v1170
    %1205 = vmatprep.subr.bf16.mxu0 %v1174
    %1206 = vmatpush1.bf16.msra.mxu0 %v1173
    %1207 = vmatprep.subr.bf16.mxu0 %v1176
    %1208 = vmatpush1.bf16.msra.mxu0 %v1175
    %1209 = vmatprep.subr.bf16.mxu0 %v1178
    %1210 = vmatpush1.bf16.msra.mxu0 %v1177
    %1211 = vmatprep.subr.bf16.mxu0 %v1180
    %1212 = vmatpush1.bf16.msra.mxu0 %v1179
    %1213 = vmatprep.subr.bf16.mxu0 %v1182
    %1214 = vmatpush1.bf16.msra.mxu0 %v1181
    %1215 = vmatprep.subr.bf16.mxu0 %v1184
    %1216 = vmatpush1.bf16.msra.mxu0 %v1183
    %1217 = vmatprep.subr.bf16.mxu0 %v1186
    %1218 = vmatpush1.bf16.msra.mxu0 %v1185
    %1219 = vmatprep.subr.bf16.mxu0 %v1188
    %1220 = vmatpush1.bf16.msra.mxu0 %v1187
    %1221 = vmatprep.subr.bf16.mxu0 0
    %1222 = vmatpush1.bf16.msra.mxu0 0
    %1223 = vmatprep.subr.bf16.mxu0 0
    %1224 = vmatpush1.bf16.msra.mxu0 0
    %1225 = vmatprep.subr.bf16.mxu0 0
    %1226 = vmatpush1.bf16.msra.mxu0 0
    %1227 = vmatprep.subr.bf16.mxu0 0
    %1228 = vmatpush1.bf16.msra.mxu0 0
    %1229 = vmatprep.subr.bf16.mxu0 0
    %1230 = vmatpush1.bf16.msra.mxu0 0
    %1231 = vmatprep.subr.bf16.mxu0 0
    %1232 = vmatpush1.bf16.msra.mxu0 0
    %1233 = vmatprep.subr.bf16.mxu0 0
    %1234 = vmatpush1.bf16.msra.mxu0 0
    %1235 = vmatprep.subr.bf16.mxu0 0
    %1236 = vmatpush1.bf16.msra.mxu0 0
    %1237 = vmatprep.mubr.bf16.mxu0 0
    %1238 = vmatmul.mubr.bf16.gmra.mrb[0].mxu0 %v965
    %v1239 = vpop.f32.mrb[0].mxu0
    %v1240 = vadd.f32 0.0, %v1239
    %v1241 = vpop.f32.mrb[0].mxu0
    %v1242 = vadd.f32 0.0, %v1241
    %v1243 = vpop.f32.mrb[0].mxu0
    %v1244 = vadd.f32 0.0, %v1243
    %v1245 = vpop.f32.mrb[0].mxu0
    %v1246 = vadd.f32 0.0, %v1245
    %1247 = vmatprep.mubr.bf16.mxu0 0
    %1248 = vmatmul.mubr.bf16.gmra.mrb[0].mxu0 %v966
    %v1249 = vpop.f32.mrb[0].mxu0
    %v1250 = vadd.f32 0.0, %v1249
    %v1251 = vpop.f32.mrb[0].mxu0
    %v1252 = vadd.f32 0.0, %v1251
    %v1253 = vpop.f32.mrb[0].mxu0
    %v1254 = vpop.f32.mrb[0].mxu0
    %1255 = vdwg.mxu0
    %v1256 = vpack.c.bf16 %v1104, %v1100
    %v1257 = vpack.c.bf16 %v1246, %v1242
    %v1258 = vpack.c.bf16 %v1252, %v1252
    %1259 = vmatprep.subr.bf16.mxu0 0
    %1260 = vmatpush1.bf16.msra.mxu0 %v1256
    %1261 = vmatprep.subr.bf16.mxu0 0
    %1262 = vmatpush1.bf16.msra.mxu0 0
    %1263 = vmatprep.subr.bf16.mxu0 0
    %1264 = vmatpush1.bf16.msra.mxu0 0
    %1265 = vmatprep.subr.bf16.mxu0 0
    %1266 = vmatpush1.bf16.msra.mxu0 0
    %1267 = vmatprep.subr.bf16.mxu0 0
    %1268 = vmatpush1.bf16.msra.mxu0 0
    %1269 = vmatprep.subr.bf16.mxu0 0
    %1270 = vmatpush1.bf16.msra.mxu0 0
    %1271 = vmatprep.subr.bf16.mxu0 0
    %1272 = vmatpush1.bf16.msra.mxu0 0
    %1273 = vmatprep.subr.bf16.mxu0 0
    %1274 = vmatpush1.bf16.msra.mxu0 0
    %1275 = vmatprep.subr.bf16.mxu0 0
    %1276 = vmatpush1.bf16.msra.mxu0 0
    %1277 = vmatprep.subr.bf16.mxu0 0
    %1278 = vmatpush1.bf16.msra.mxu0 0
    %1279 = vmatprep.subr.bf16.mxu0 0
    %1280 = vmatpush1.bf16.msra.mxu0 0
    %1281 = vmatprep.subr.bf16.mxu0 0
    %1282 = vmatpush1.bf16.msra.mxu0 0
    %1283 = vmatprep.subr.bf16.mxu0 0
    %1284 = vmatpush1.bf16.msra.mxu0 0
    %1285 = vmatprep.subr.bf16.mxu0 0
    %1286 = vmatpush1.bf16.msra.mxu0 0
    %1287 = vmatprep.subr.bf16.mxu0 0
    %1288 = vmatpush1.bf16.msra.mxu0 0
    %1289 = vmatprep.subr.bf16.mxu0 0
    %1290 = vmatpush1.bf16.msra.mxu0 0
    %1291 = vmatprep.mubr.bf16.mxu0 0
    %1292 = vmatmul.mubr.bf16.gmra.mrb[0].mxu0 %v422
    %v1293 = vpop.f32.mrb[0].mxu0
    %v1294 = vadd.f32 %v1240, %v1293
    %v1295 = vpop.f32.mrb[0].mxu0
    %v1296 = vpop.f32.mrb[0].mxu0
    %v1297 = vadd.f32 %v1244, %v1296
    %v1298 = vpop.f32.mrb[0].mxu0
    %1299 = vmatprep.mubr.bf16.mxu0 0
    %1300 = vmatmul.mubr.bf16.gmra.mrb[0].mxu0 %v425
    %v1301 = vpop.f32.mrb[0].mxu0
    %v1302 = vadd.f32 %v1250, %v1301
    %v1303 = vpop.f32.mrb[0].mxu0
    %v1304 = vpop.f32.mrb[0].mxu0
    %v1305 = vpop.f32.mrb[0].mxu0
    %1306 = vdwg.mxu0
    %s1307 = scalar_lea.vmem %s6, 2
    %v1308 = vld [vmem:[%s1307] sm:$0x1]
    %v1310 = vlaneseq
    %v1311 = vshrl.u32 %v1310, 7
    %v1312 = vsub.s32 0, %v1311
    %v1313 = vrot.slane %v1308, %v1312
    %v1315 = vadd.f32 %v1294, %v1313
    %v1316 = vadd.f32 %v1297, %v1313
    %v1317 = vadd.f32 %v1302, %v1313
    %v1319 = vsel %vm494, %v1258, 0
    %1321 = vmatprep.subr.bf16.mxu0 0
    %1322 = vmatpush1.bf16.msra.mxu0 %v1257
    %1323 = vmatprep.subr.bf16.mxu0 0
    %1324 = vmatpush1.bf16.msra.mxu0 %v1319
    %1325 = vmatprep.subr.bf16.mxu0 0
    %1326 = vmatpush1.bf16.msra.mxu0 0
    %1327 = vmatprep.subr.bf16.mxu0 0
    %1328 = vmatpush1.bf16.msra.mxu0 0
    %1329 = vmatprep.subr.bf16.mxu0 0
    %1330 = vmatpush1.bf16.msra.mxu0 0
    %1331 = vmatprep.subr.bf16.mxu0 0
    %1332 = vmatpush1.bf16.msra.mxu0 0
    %1333 = vmatprep.subr.bf16.mxu0 0
    %1334 = vmatpush1.bf16.msra.mxu0 0
    %1335 = vmatprep.subr.bf16.mxu0 0
    %1336 = vmatpush1.bf16.msra.mxu0 0
    %1337 = vmatprep.subr.bf16.mxu0 0
    %1338 = vmatpush1.bf16.msra.mxu0 0
    %1339 = vmatprep.subr.bf16.mxu0 0
    %1340 = vmatpush1.bf16.msra.mxu0 0
    %1341 = vmatprep.subr.bf16.mxu0 0
    %1342 = vmatpush1.bf16.msra.mxu0 0
    %1343 = vmatprep.subr.bf16.mxu0 0
    %1344 = vmatpush1.bf16.msra.mxu0 0
    %1345 = vmatprep.subr.bf16.mxu0 0
    %1346 = vmatpush1.bf16.msra.mxu0 0
    %1347 = vmatprep.subr.bf16.mxu0 0
    %1348 = vmatpush1.bf16.msra.mxu0 0
    %1349 = vmatprep.subr.bf16.mxu0 0
    %1350 = vmatpush1.bf16.msra.mxu0 0
    %1351 = vmatprep.subr.bf16.mxu0 0
    %1352 = vmatpush1.bf16.msra.mxu0 0
    %1353 = vmatprep.mubr.bf16.mxu0 0
    %1354 = vmatmul.mubr.bf16.gmra.mrb[0].mxu0 %v492
    %v1355 = vpop.f32.mrb[0].mxu0
    %v1356 = vadd.f32 %v1102, %v1355
    %v1357 = vpop.f32.mrb[0].mxu0
    %v1358 = vpop.f32.mrb[0].mxu0
    %v1359 = vadd.f32 %v1106, %v1358
    %v1360 = vpop.f32.mrb[0].mxu0
    %1361 = vdwg.mxu0
    %s1362 = scalar_lea.vmem [#allocation5], 2
    %v1363 = vld [vmem:[%s1362] sm:$0x1]
    %v1365 = vlaneseq
    %v1366 = vshrl.u32 %v1365, 7
    %v1367 = vsub.s32 0, %v1366
    %v1368 = vrot.slane %v1363, %v1367
    %v1370 = vadd.f32 %v1356, %v1368
    %v1371 = vadd.f32 %v1359, %v1368
    %v1372 = vpack.c.bf16 %v1316, %v1315
    %v1373 = vpack.c.bf16 %v1317, %v1317
    %v1374 = vpack.c.bf16 %v1371, %v1370
    %v1375 = vlaneseq
    %v1376 = vand.u32 %v1375, 127
    %v1377 = vld [vmem:[%s14] sm:$0xff]
    %v1378 = vld [vmem:[%s14 + $0x8] sm:$0xff]
    %v1379 = vld [vmem:[%s14 + $0x10] sm:$0xff]
    %v1380 = vld [vmem:[%s14 + $0x18] sm:$0xff]
    %v1381 = vld [vmem:[%s14 + $0x20] sm:$0xff]
    %v1382 = vld [vmem:[%s14 + $0x28] sm:$0xff]
    %v1383 = vld [vmem:[%s14 + $0x30] sm:$0xff]
    %v1384 = vld [vmem:[%s14 + $0x38] sm:$0xff]
    %v1385 = vld [vmem:[%s14 + $0x40] sm:$0xff]
    %v1386 = vld [vmem:[%s14 + $0x48] sm:$0xff]
    %v1387 = vld [vmem:[%s14 + $0x50] sm:$0xff]
    %v1388 = vld [vmem:[%s14 + $0x58] sm:$0xff]
    %v1389 = vld [vmem:[%s14 + $0x60] sm:$0xff]
    %v1390 = vld [vmem:[%s14 + $0x68] sm:$0xff]
    %v1391 = vld [vmem:[%s14 + $0x70] sm:$0xff]
    %v1392 = vld [vmem:[%s14 + $0x78] sm:$0xff]
    %1393 = vset.pattern.permute.xlu0 0
    %1394 = vperm.xlu0 %1393, %v1377
    %v1395 = vpop.permute.xlu0 %1394
    %1396 = vset.pattern.permute.xlu0 0
    %1397 = vperm.xlu0 %1396, %v1378
    %v1398 = vpop.permute.xlu0 %1397
    %1399 = vset.pattern.permute.xlu0 0
    %1400 = vperm.xlu0 %1399, %v1379
    %v1401 = vpop.permute.xlu0 %1400
    %1402 = vset.pattern.permute.xlu0 0
    %1403 = vperm.xlu0 %1402, %v1380
    %v1404 = vpop.permute.xlu0 %1403
    %1405 = vset.pattern.permute.xlu0 0
    %1406 = vperm.xlu0 %1405, %v1381
    %v1407 = vpop.permute.xlu0 %1406
    %1408 = vset.pattern.permute.xlu0 0
    %1409 = vperm.xlu0 %1408, %v1382
    %v1410 = vpop.permute.xlu0 %1409
    %1411 = vset.pattern.permute.xlu0 0
    %1412 = vperm.xlu0 %1411, %v1383
    %v1413 = vpop.permute.xlu0 %1412
    %1414 = vset.pattern.permute.xlu0 0
    %1415 = vperm.xlu0 %1414, %v1384
    %v1416 = vpop.permute.xlu0 %1415
    %1417 = vset.pattern.permute.xlu0 0
    %1418 = vperm.xlu0 %1417, %v1385
    %v1419 = vpop.permute.xlu0 %1418
    %1420 = vset.pattern.permute.xlu0 0
    %1421 = vperm.xlu0 %1420, %v1386
    %v1422 = vpop.permute.xlu0 %1421
    %1423 = vset.pattern.permute.xlu0 0
    %1424 = vperm.xlu0 %1423, %v1387
    %v1425 = vpop.permute.xlu0 %1424
    %1426 = vset.pattern.permute.xlu0 0
    %1427 = vperm.xlu0 %1426, %v1388
    %v1428 = vpop.permute.xlu0 %1427
    %1429 = vset.pattern.permute.xlu0 0
    %1430 = vperm.xlu0 %1429, %v1389
    %v1431 = vpop.permute.xlu0 %1430
    %1432 = vset.pattern.permute.xlu0 0
    %1433 = vperm.xlu0 %1432, %v1390
    %v1434 = vpop.permute.xlu0 %1433
    %1435 = vset.pattern.permute.xlu0 0
    %1436 = vperm.xlu0 %1435, %v1391
    %v1437 = vpop.permute.xlu0 %1436
    %1438 = vset.pattern.permute.xlu0 0
    %1439 = vperm.xlu0 %1438, %v1392
    %v1440 = vpop.permute.xlu0 %1439
    %vm1441 = vcmp.eq.s32.totalorder %v1376, %v1395
    %vm1442 = vcmp.eq.s32.totalorder %v1376, %v1398
    %vm1443 = vcmp.eq.s32.totalorder %v1376, %v1401
    %vm1444 = vcmp.eq.s32.totalorder %v1376, %v1404
    %vm1445 = vcmp.eq.s32.totalorder %v1376, %v1407
    %vm1446 = vcmp.eq.s32.totalorder %v1376, %v1410
    %vm1447 = vcmp.eq.s32.totalorder %v1376, %v1413
    %vm1448 = vcmp.eq.s32.totalorder %v1376, %v1416
    %vm1449 = vcmp.eq.s32.totalorder %v1376, %v1419
    %vm1450 = vcmp.eq.s32.totalorder %v1376, %v1422
    %vm1451 = vcmp.eq.s32.totalorder %v1376, %v1425
    %vm1452 = vcmp.eq.s32.totalorder %v1376, %v1428
    %vm1453 = vcmp.eq.s32.totalorder %v1376, %v1431
    %vm1454 = vcmp.eq.s32.totalorder %v1376, %v1434
    %vm1455 = vcmp.eq.s32.totalorder %v1376, %v1437
    %vm1456 = vcmp.eq.s32.totalorder %v1376, %v1440
    %v1457 = vsel %vm1441, 1, 0
    %v1458 = vsel %vm1442, 1, 0
    %v1459 = vsel %vm1443, 1, 0
    %v1460 = vsel %vm1444, 1, 0
    %v1461 = vsel %vm1445, 1, 0
    %v1462 = vsel %vm1446, 1, 0
    %v1463 = vsel %vm1447, 1, 0
    %v1464 = vsel %vm1448, 1, 0
    %v1465 = vsel %vm1449, 1, 0
    %v1466 = vsel %vm1450, 1, 0
    %v1467 = vsel %vm1451, 1, 0
    %v1468 = vsel %vm1452, 1, 0
    %v1469 = vsel %vm1453, 1, 0
    %v1470 = vsel %vm1454, 1, 0
    %v1471 = vsel %vm1455, 1, 0
    %v1472 = vsel %vm1456, 1, 0
    %v1473 = vcvt.s32.f32 %v1457
    %v1474 = vcvt.s32.f32 %v1458
    %v1475 = vcvt.s32.f32 %v1459
    %v1476 = vcvt.s32.f32 %v1460
    %v1477 = vcvt.s32.f32 %v1461
    %v1478 = vcvt.s32.f32 %v1462
    %v1479 = vcvt.s32.f32 %v1463
    %v1480 = vcvt.s32.f32 %v1464
    %v1481 = vcvt.s32.f32 %v1465
    %v1482 = vcvt.s32.f32 %v1466
    %v1483 = vcvt.s32.f32 %v1467
    %v1484 = vcvt.s32.f32 %v1468
    %v1485 = vcvt.s32.f32 %v1469
    %v1486 = vcvt.s32.f32 %v1470
    %v1487 = vcvt.s32.f32 %v1471
    %v1488 = vcvt.s32.f32 %v1472
    %v1489 = vpack.c.bf16 %v1474, %v1473
    %v1490 = vpack.c.bf16 %v1476, %v1475
    %v1491 = vpack.c.bf16 %v1478, %v1477
    %v1492 = vpack.c.bf16 %v1480, %v1479
    %v1493 = vpack.c.bf16 %v1482, %v1481
    %v1494 = vpack.c.bf16 %v1484, %v1483
    %v1495 = vpack.c.bf16 %v1486, %v1485
    %v1496 = vpack.c.bf16 %v1488, %v1487
    %v1497 = vld [vmem:[%s15] sm:$0xff]
    %v1498 = vld [vmem:[%s15 + $0x8] sm:$0xff]
    %v1499 = vld [vmem:[%s15 + $0x10] sm:$0xff]
    %v1500 = vld [vmem:[%s15 + $0x18] sm:$0xff]
    %v1501 = vld [vmem:[%s15 + $0x20] sm:$0xff]
    %v1502 = vld [vmem:[%s15 + $0x28] sm:$0xff]
    %v1503 = vld [vmem:[%s15 + $0x30] sm:$0xff]
    %v1504 = vld [vmem:[%s15 + $0x38] sm:$0xff]
    %v1505 = vld [vmem:[%s15 + $0x40] sm:$0xff]
    %v1506 = vld [vmem:[%s15 + $0x48] sm:$0xff]
    %v1507 = vld [vmem:[%s15 + $0x50] sm:$0xff]
    %v1508 = vld [vmem:[%s15 + $0x58] sm:$0xff]
    %v1509 = vld [vmem:[%s15 + $0x60] sm:$0xff]
    %v1510 = vld [vmem:[%s15 + $0x68] sm:$0xff]
    %v1511 = vld [vmem:[%s15 + $0x70] sm:$0xff]
    %v1512 = vld [vmem:[%s15 + $0x78] sm:$0xff]
    %1513 = vset.pattern.permute.xlu0 0
    %1514 = vperm.xlu0 %1513, %v1497
    %v1515 = vpop.permute.xlu0 %1514
    %1516 = vset.pattern.permute.xlu0 0
    %1517 = vperm.xlu0 %1516, %v1498
    %v1518 = vpop.permute.xlu0 %1517
    %1519 = vset.pattern.permute.xlu0 0
    %1520 = vperm.xlu0 %1519, %v1499
    %v1521 = vpop.permute.xlu0 %1520
    %1522 = vset.pattern.permute.xlu0 0
    %1523 = vperm.xlu0 %1522, %v1500
    %v1524 = vpop.permute.xlu0 %1523
    %1525 = vset.pattern.permute.xlu0 0
    %1526 = vperm.xlu0 %1525, %v1501
    %v1527 = vpop.permute.xlu0 %1526
    %1528 = vset.pattern.permute.xlu0 0
    %1529 = vperm.xlu0 %1528, %v1502
    %v1530 = vpop.permute.xlu0 %1529
    %1531 = vset.pattern.permute.xlu0 0
    %1532 = vperm.xlu0 %1531, %v1503
    %v1533 = vpop.permute.xlu0 %1532
    %1534 = vset.pattern.permute.xlu0 0
    %1535 = vperm.xlu0 %1534, %v1504
    %v1536 = vpop.permute.xlu0 %1535
    %1537 = vset.pattern.permute.xlu0 0
    %1538 = vperm.xlu0 %1537, %v1505
    %v1539 = vpop.permute.xlu0 %1538
    %1540 = vset.pattern.permute.xlu0 0
    %1541 = vperm.xlu0 %1540, %v1506
    %v1542 = vpop.permute.xlu0 %1541
    %1543 = vset.pattern.permute.xlu0 0
    %1544 = vperm.xlu0 %1543, %v1507
    %v1545 = vpop.permute.xlu0 %1544
    %1546 = vset.pattern.permute.xlu0 0
    %1547 = vperm.xlu0 %1546, %v1508
    %v1548 = vpop.permute.xlu0 %1547
    %1549 = vset.pattern.permute.xlu0 0
    %1550 = vperm.xlu0 %1549, %v1509
    %v1551 = vpop.permute.xlu0 %1550
    %1552 = vset.pattern.permute.xlu0 0
    %1553 = vperm.xlu0 %1552, %v1510
    %v1554 = vpop.permute.xlu0 %1553
    %1555 = vset.pattern.permute.xlu0 0
    %1556 = vperm.xlu0 %1555, %v1511
    %v1557 = vpop.permute.xlu0 %1556
    %1558 = vset.pattern.permute.xlu0 0
    %1559 = vperm.xlu0 %1558, %v1512
    %v1560 = vpop.permute.xlu0 %1559
    %vm1561 = vcmp.eq.s32.totalorder %v1376, %v1515
    %vm1562 = vcmp.eq.s32.totalorder %v1376, %v1518
    %vm1563 = vcmp.eq.s32.totalorder %v1376, %v1521
    %vm1564 = vcmp.eq.s32.totalorder %v1376, %v1524
    %vm1565 = vcmp.eq.s32.totalorder %v1376, %v1527
    %vm1566 = vcmp.eq.s32.totalorder %v1376, %v1530
    %vm1567 = vcmp.eq.s32.totalorder %v1376, %v1533
    %vm1568 = vcmp.eq.s32.totalorder %v1376, %v1536
    %vm1569 = vcmp.eq.s32.totalorder %v1376, %v1539
    %vm1570 = vcmp.eq.s32.totalorder %v1376, %v1542
    %vm1571 = vcmp.eq.s32.totalorder %v1376, %v1545
    %vm1572 = vcmp.eq.s32.totalorder %v1376, %v1548
    %vm1573 = vcmp.eq.s32.totalorder %v1376, %v1551
    %vm1574 = vcmp.eq.s32.totalorder %v1376, %v1554
    %vm1575 = vcmp.eq.s32.totalorder %v1376, %v1557
    %vm1576 = vcmp.eq.s32.totalorder %v1376, %v1560
    %v1577 = vsel %vm1561, 1, 0
    %v1578 = vsel %vm1562, 1, 0
    %v1579 = vsel %vm1563, 1, 0
    %v1580 = vsel %vm1564, 1, 0
    %v1581 = vsel %vm1565, 1, 0
    %v1582 = vsel %vm1566, 1, 0
    %v1583 = vsel %vm1567, 1, 0
    %v1584 = vsel %vm1568, 1, 0
    %v1585 = vsel %vm1569, 1, 0
    %v1586 = vsel %vm1570, 1, 0
    %v1587 = vsel %vm1571, 1, 0
    %v1588 = vsel %vm1572, 1, 0
    %v1589 = vsel %vm1573, 1, 0
    %v1590 = vsel %vm1574, 1, 0
    %v1591 = vsel %vm1575, 1, 0
    %v1592 = vsel %vm1576, 1, 0
    %v1593 = vcvt.s32.f32 %v1577
    %v1594 = vcvt.s32.f32 %v1578
    %v1595 = vcvt.s32.f32 %v1579
    %v1596 = vcvt.s32.f32 %v1580
    %v1597 = vcvt.s32.f32 %v1581
    %v1598 = vcvt.s32.f32 %v1582
    %v1599 = vcvt.s32.f32 %v1583
    %v1600 = vcvt.s32.f32 %v1584
    %v1601 = vcvt.s32.f32 %v1585
    %v1602 = vcvt.s32.f32 %v1586
    %v1603 = vcvt.s32.f32 %v1587
    %v1604 = vcvt.s32.f32 %v1588
    %v1605 = vcvt.s32.f32 %v1589
    %v1606 = vcvt.s32.f32 %v1590
    %v1607 = vcvt.s32.f32 %v1591
    %v1608 = vcvt.s32.f32 %v1592
    %v1609 = vpack.c.bf16 %v1594, %v1593
    %v1610 = vpack.c.bf16 %v1596, %v1595
    %v1611 = vpack.c.bf16 %v1598, %v1597
    %v1612 = vpack.c.bf16 %v1600, %v1599
    %v1613 = vpack.c.bf16 %v1602, %v1601
    %v1614 = vpack.c.bf16 %v1604, %v1603
    %v1615 = vpack.c.bf16 %v1606, %v1605
    %v1616 = vpack.c.bf16 %v1608, %v1607
    %v1618 = vsel %vm420, %v1489, 0
    %v1621 = vsel %vm420, %v1490, 0
    %v1624 = vsel %vm420, %v1491, 0
    %v1627 = vsel %vm420, %v1492, 0
    %v1630 = vsel %vm420, %v1493, 0
    %v1633 = vsel %vm420, %v1494, 0
    %v1636 = vsel %vm420, %v1495, 0
    %v1639 = vsel %vm420, %v1496, 0
    %1641 = vmatprep.subr.bf16.mxu0 0
    %1642 = vmatpush1.bf16.msra.mxu0 %v1374
    %1643 = vmatprep.subr.bf16.mxu0 0
    %1644 = vmatpush1.bf16.msra.mxu0 0
    %1645 = vmatprep.subr.bf16.mxu0 0
    %1646 = vmatpush1.bf16.msra.mxu0 0
    %1647 = vmatprep.subr.bf16.mxu0 0
    %1648 = vmatpush1.bf16.msra.mxu0 0
    %1649 = vmatprep.subr.bf16.mxu0 0
    %1650 = vmatpush1.bf16.msra.mxu0 0
    %1651 = vmatprep.subr.bf16.mxu0 0
    %1652 = vmatpush1.bf16.msra.mxu0 0
    %1653 = vmatprep.subr.bf16.mxu0 0
    %1654 = vmatpush1.bf16.msra.mxu0 0
    %1655 = vmatprep.subr.bf16.mxu0 0
    %1656 = vmatpush1.bf16.msra.mxu0 0
    %1657 = vmatprep.subr.bf16.mxu0 0
    %1658 = vmatpush1.bf16.msra.mxu0 0
    %1659 = vmatprep.subr.bf16.mxu0 0
    %1660 = vmatpush1.bf16.msra.mxu0 0
    %1661 = vmatprep.subr.bf16.mxu0 0
    %1662 = vmatpush1.bf16.msra.mxu0 0
    %1663 = vmatprep.subr.bf16.mxu0 0
    %1664 = vmatpush1.bf16.msra.mxu0 0
    %1665 = vmatprep.subr.bf16.mxu0 0
    %1666 = vmatpush1.bf16.msra.mxu0 0
    %1667 = vmatprep.subr.bf16.mxu0 0
    %1668 = vmatpush1.bf16.msra.mxu0 0
    %1669 = vmatprep.subr.bf16.mxu0 0
    %1670 = vmatpush1.bf16.msra.mxu0 0
    %1671 = vmatprep.subr.bf16.mxu0 0
    %1672 = vmatpush1.bf16.msra.mxu0 0
    %1673 = vmatprep.mubr.bf16.mxu0 0
    %1674 = vmatmul.mubr.bf16.gmra.mrb[0].mxu0 %v1618
    %v1675 = vpop.f32.mrb[0].mxu0
    %v1676 = vadd.f32 0.0, %v1675
    %v1677 = vpop.f32.mrb[0].mxu0
    %v1678 = vpop.f32.mrb[0].mxu0
    %v1679 = vadd.f32 0.0, %v1678
    %v1680 = vpop.f32.mrb[0].mxu0
    %1681 = vmatprep.mubr.bf16.mxu0 0
    %1682 = vmatmul.mubr.bf16.gmra.mrb[0].mxu0 %v1621
    %v1683 = vpop.f32.mrb[0].mxu0
    %v1684 = vadd.f32 0.0, %v1683
    %v1685 = vpop.f32.mrb[0].mxu0
    %v1686 = vpop.f32.mrb[0].mxu0
    %v1687 = vadd.f32 0.0, %v1686
    %v1688 = vpop.f32.mrb[0].mxu0
    %1689 = vmatprep.mubr.bf16.mxu0 0
    %1690 = vmatmul.mubr.bf16.gmra.mrb[0].mxu0 %v1624
    %v1691 = vpop.f32.mrb[0].mxu0
    %v1692 = vadd.f32 0.0, %v1691
    %v1693 = vpop.f32.mrb[0].mxu0
    %v1694 = vpop.f32.mrb[0].mxu0
    %v1695 = vadd.f32 0.0, %v1694
    %v1696 = vpop.f32.mrb[0].mxu0
    %1697 = vmatprep.mubr.bf16.mxu0 0
    %1698 = vmatmul.mubr.bf16.gmra.mrb[0].mxu0 %v1627
    %v1699 = vpop.f32.mrb[0].mxu0
    %v1700 = vadd.f32 0.0, %v1699
    %v1701 = vpop.f32.mrb[0].mxu0
    %v1702 = vpop.f32.mrb[0].mxu0
    %v1703 = vadd.f32 0.0, %v1702
    %v1704 = vpop.f32.mrb[0].mxu0
    %1705 = vmatprep.mubr.bf16.mxu0 0
    %1706 = vmatmul.mubr.bf16.gmra.mrb[0].mxu0 %v1630
    %v1707 = vpop.f32.mrb[0].mxu0
    %v1708 = vadd.f32 0.0, %v1707
    %v1709 = vpop.f32.mrb[0].mxu0
    %v1710 = vpop.f32.mrb[0].mxu0
    %v1711 = vadd.f32 0.0, %v1710
    %v1712 = vpop.f32.mrb[0].mxu0
    %1713 = vmatprep.mubr.bf16.mxu0 0
    %1714 = vmatmul.mubr.bf16.gmra.mrb[0].mxu0 %v1633
    %v1715 = vpop.f32.mrb[0].mxu0
    %v1716 = vadd.f32 0.0, %v1715
    %v1717 = vpop.f32.mrb[0].mxu0
    %v1718 = vpop.f32.mrb[0].mxu0
    %v1719 = vadd.f32 0.0, %v1718
    %v1720 = vpop.f32.mrb[0].mxu0
    %1721 = vmatprep.mubr.bf16.mxu0 0
    %1722 = vmatmul.mubr.bf16.gmra.mrb[0].mxu0 %v1636
    %v1723 = vpop.f32.mrb[0].mxu0
    %v1724 = vadd.f32 0.0, %v1723
    %v1725 = vpop.f32.mrb[0].mxu0
    %v1726 = vpop.f32.mrb[0].mxu0
    %v1727 = vadd.f32 0.0, %v1726
    %v1728 = vpop.f32.mrb[0].mxu0
    %1729 = vmatprep.mubr.bf16.mxu0 0
    %1730 = vmatmul.mubr.bf16.gmra.mrb[0].mxu0 %v1639
    %v1731 = vpop.f32.mrb[0].mxu0
    %v1732 = vadd.f32 0.0, %v1731
    %v1733 = vpop.f32.mrb[0].mxu0
    %v1734 = vpop.f32.mrb[0].mxu0
    %v1735 = vadd.f32 0.0, %v1734
    %v1736 = vpop.f32.mrb[0].mxu0
    %1737 = vdwg.mxu0
    %v1738 = vpack.c.bf16 %v1679, %v1676
    %v1739 = vpack.c.bf16 %v1687, %v1684
    %v1740 = vpack.c.bf16 %v1695, %v1692
    %v1741 = vpack.c.bf16 %v1703, %v1700
    %v1742 = vpack.c.bf16 %v1711, %v1708
    %v1743 = vpack.c.bf16 %v1719, %v1716
    %v1744 = vpack.c.bf16 %v1727, %v1724
    %v1745 = vpack.c.bf16 %v1735, %v1732
    %v1747 = vsel %vm490, %v1609, 0
    %v1750 = vsel %vm490, %v1610, 0
    %v1753 = vsel %vm490, %v1611, 0
    %v1756 = vsel %vm490, %v1612, 0
    %v1759 = vsel %vm490, %v1613, 0
    %v1762 = vsel %vm490, %v1614, 0
    %v1765 = vsel %vm490, %v1615, 0
    %v1768 = vsel %vm490, %v1616, 0
    %v1771 = vsel %vm494, %v1373, 0
    %1773 = vmatprep.subr.bf16.mxu0 0
    %1774 = vmatpush1.bf16.msra.mxu0 %v1372
    %1775 = vmatprep.subr.bf16.mxu0 0
    %1776 = vmatpush1.bf16.msra.mxu0 %v1771
    %1777 = vmatprep.subr.bf16.mxu0 0
    %1778 = vmatpush1.bf16.msra.mxu0 0
    %1779 = vmatprep.subr.bf16.mxu0 0
    %1780 = vmatpush1.bf16.msra.mxu0 0
    %1781 = vmatprep.subr.bf16.mxu0 0
    %1782 = vmatpush1.bf16.msra.mxu0 0
    %1783 = vmatprep.subr.bf16.mxu0 0
    %1784 = vmatpush1.bf16.msra.mxu0 0
    %1785 = vmatprep.subr.bf16.mxu0 0
    %1786 = vmatpush1.bf16.msra.mxu0 0
    %1787 = vmatprep.subr.bf16.mxu0 0
    %1788 = vmatpush1.bf16.msra.mxu0 0
    %1789 = vmatprep.subr.bf16.mxu0 0
    %1790 = vmatpush1.bf16.msra.mxu0 0
    %1791 = vmatprep.subr.bf16.mxu0 0
    %1792 = vmatpush1.bf16.msra.mxu0 0
    %1793 = vmatprep.subr.bf16.mxu0 0
    %1794 = vmatpush1.bf16.msra.mxu0 0
    %1795 = vmatprep.subr.bf16.mxu0 0
    %1796 = vmatpush1.bf16.msra.mxu0 0
    %1797 = vmatprep.subr.bf16.mxu0 0
    %1798 = vmatpush1.bf16.msra.mxu0 0
    %1799 = vmatprep.subr.bf16.mxu0 0
    %1800 = vmatpush1.bf16.msra.mxu0 0
    %1801 = vmatprep.subr.bf16.mxu0 0
    %1802 = vmatpush1.bf16.msra.mxu0 0
    %1803 = vmatprep.subr.bf16.mxu0 0
    %1804 = vmatpush1.bf16.msra.mxu0 0
    %1805 = vmatprep.mubr.bf16.mxu0 0
    %1806 = vmatmul.mubr.bf16.gmra.mrb[0].mxu0 %v1747
    %v1807 = vpop.f32.mrb[0].mxu0
    %v1808 = vadd.f32 0.0, %v1807
    %v1809 = vpop.f32.mrb[0].mxu0
    %v1810 = vpop.f32.mrb[0].mxu0
    %v1811 = vadd.f32 0.0, %v1810
    %v1812 = vpop.f32.mrb[0].mxu0
    %1813 = vmatprep.mubr.bf16.mxu0 0
    %1814 = vmatmul.mubr.bf16.gmra.mrb[0].mxu0 %v1750
    %v1815 = vpop.f32.mrb[0].mxu0
    %v1816 = vadd.f32 0.0, %v1815
    %v1817 = vpop.f32.mrb[0].mxu0
    %v1818 = vpop.f32.mrb[0].mxu0
    %v1819 = vadd.f32 0.0, %v1818
    %v1820 = vpop.f32.mrb[0].mxu0
    %1821 = vmatprep.mubr.bf16.mxu0 0
    %1822 = vmatmul.mubr.bf16.gmra.mrb[0].mxu0 %v1753
    %v1823 = vpop.f32.mrb[0].mxu0
    %v1824 = vadd.f32 0.0, %v1823
    %v1825 = vpop.f32.mrb[0].mxu0
    %v1826 = vpop.f32.mrb[0].mxu0
    %v1827 = vadd.f32 0.0, %v1826
    %v1828 = vpop.f32.mrb[0].mxu0
    %1829 = vmatprep.mubr.bf16.mxu0 0
    %1830 = vmatmul.mubr.bf16.gmra.mrb[0].mxu0 %v1756
    %v1831 = vpop.f32.mrb[0].mxu0
    %v1832 = vadd.f32 0.0, %v1831
    %v1833 = vpop.f32.mrb[0].mxu0
    %v1834 = vpop.f32.mrb[0].mxu0
    %v1835 = vadd.f32 0.0, %v1834
    %v1836 = vpop.f32.mrb[0].mxu0
    %1837 = vmatprep.mubr.bf16.mxu0 0
    %1838 = vmatmul.mubr.bf16.gmra.mrb[0].mxu0 %v1759
    %v1839 = vpop.f32.mrb[0].mxu0
    %v1840 = vadd.f32 0.0, %v1839
    %v1841 = vpop.f32.mrb[0].mxu0
    %v1842 = vpop.f32.mrb[0].mxu0
    %v1843 = vadd.f32 0.0, %v1842
    %v1844 = vpop.f32.mrb[0].mxu0
    %1845 = vmatprep.mubr.bf16.mxu0 0
    %1846 = vmatmul.mubr.bf16.gmra.mrb[0].mxu0 %v1762
    %v1847 = vpop.f32.mrb[0].mxu0
    %v1848 = vadd.f32 0.0, %v1847
    %v1849 = vpop.f32.mrb[0].mxu0
    %v1850 = vpop.f32.mrb[0].mxu0
    %v1851 = vadd.f32 0.0, %v1850
    %v1852 = vpop.f32.mrb[0].mxu0
    %1853 = vmatprep.mubr.bf16.mxu0 0
    %1854 = vmatmul.mubr.bf16.gmra.mrb[0].mxu0 %v1765
    %v1855 = vpop.f32.mrb[0].mxu0
    %v1856 = vadd.f32 0.0, %v1855
    %v1857 = vpop.f32.mrb[0].mxu0
    %v1858 = vpop.f32.mrb[0].mxu0
    %v1859 = vadd.f32 0.0, %v1858
    %v1860 = vpop.f32.mrb[0].mxu0
    %1861 = vmatprep.mubr.bf16.mxu0 0
    %1862 = vmatmul.mubr.bf16.gmra.mrb[0].mxu0 %v1768
    %v1863 = vpop.f32.mrb[0].mxu0
    %v1864 = vadd.f32 0.0, %v1863
    %v1865 = vpop.f32.mrb[0].mxu0
    %v1866 = vpop.f32.mrb[0].mxu0
    %v1867 = vadd.f32 0.0, %v1866
    %v1868 = vpop.f32.mrb[0].mxu0
    %1869 = vdwg.mxu0
    %v1870 = vpack.c.bf16 %v1811, %v1808
    %v1871 = vpack.c.bf16 %v1819, %v1816
    %v1872 = vpack.c.bf16 %v1827, %v1824
    %v1873 = vpack.c.bf16 %v1835, %v1832
    %v1874 = vpack.c.bf16 %v1843, %v1840
    %v1875 = vpack.c.bf16 %v1851, %v1848
    %v1876 = vpack.c.bf16 %v1859, %v1856
    %v1877 = vpack.c.bf16 %v1867, %v1864
    %v1878 = vld [vmem:[%s8] sm:$0xf]
    %v1879 = vld [vmem:[%s8 + $0x4] sm:$0xf]
    %v1880 = vld [vmem:[%s8 + $0x8] sm:$0xf]
    %v1881 = vld [vmem:[%s8 + $0xc] sm:$0xf]
    %v1882 = vld [vmem:[%s8 + $0x10] sm:$0xf]
    %v1883 = vld [vmem:[%s8 + $0x14] sm:$0xf]
    %v1884 = vld [vmem:[%s8 + $0x18] sm:$0xf]
    %v1885 = vld [vmem:[%s8 + $0x1c] sm:$0xf]
    %v1886 = vld [vmem:[%s8 + $0x20] sm:$0xf]
    %v1887 = vld [vmem:[%s8 + $0x24] sm:$0xf]
    %v1888 = vld [vmem:[%s8 + $0x28] sm:$0xf]
    %v1889 = vld [vmem:[%s8 + $0x2c] sm:$0xf]
    %v1890 = vld [vmem:[%s8 + $0x30] sm:$0xf]
    %v1891 = vld [vmem:[%s8 + $0x34] sm:$0xf]
    %v1892 = vld [vmem:[%s8 + $0x38] sm:$0xf]
    %v1893 = vld [vmem:[%s8 + $0x3c] sm:$0xf]
    %v1894 = vld [vmem:[%s8 + $0x40] sm:$0xf]
    %v1895 = vld [vmem:[%s8 + $0x44] sm:$0xf]
    %v1896 = vld [vmem:[%s8 + $0x48] sm:$0xf]
    %v1897 = vld [vmem:[%s8 + $0x4c] sm:$0xf]
    %v1898 = vld [vmem:[%s8 + $0x50] sm:$0xf]
    %v1899 = vld [vmem:[%s8 + $0x54] sm:$0xf]
    %v1900 = vld [vmem:[%s8 + $0x58] sm:$0xf]
    %v1901 = vld [vmem:[%s8 + $0x5c] sm:$0xf]
    %v1902 = vld [vmem:[%s8 + $0x60] sm:$0xf]
    %v1903 = vld [vmem:[%s8 + $0x64] sm:$0xf]
    %v1904 = vld [vmem:[%s8 + $0x68] sm:$0xf]
    %v1905 = vld [vmem:[%s8 + $0x6c] sm:$0xf]
    %v1906 = vld [vmem:[%s8 + $0x70] sm:$0xf]
    %v1907 = vld [vmem:[%s8 + $0x74] sm:$0xf]
    %v1908 = vld [vmem:[%s8 + $0x78] sm:$0xf]
    %v1909 = vld [vmem:[%s8 + $0x7c] sm:$0xf]
    %v1910 = vld [vmem:[%s9] sm:$0x1]
    %v1912 = vlaneseq
    %v1913 = vshrl.u32 %v1912, 7
    %v1914 = vsub.s32 0, %v1913
    %v1915 = vrot.slane %v1910, %v1914
    %v1949 = vunpack.c.l.b16 %v1878
    %v1950 = vunpack.c.l.b16 %v1879
    %v1951 = vunpack.c.l.b16 %v1880
    %v1952 = vunpack.c.l.b16 %v1881
    %v1953 = vunpack.c.l.b16 %v1882
    %v1954 = vunpack.c.l.b16 %v1883
    %v1955 = vunpack.c.l.b16 %v1884
    %v1956 = vunpack.c.l.b16 %v1885
    %v1957 = vunpack.c.l.b16 %v1886
    %v1958 = vunpack.c.l.b16 %v1887
    %v1959 = vunpack.c.l.b16 %v1888
    %v1960 = vunpack.c.l.b16 %v1889
    %v1961 = vunpack.c.l.b16 %v1890
    %v1962 = vunpack.c.l.b16 %v1891
    %v1963 = vunpack.c.l.b16 %v1892
    %v1964 = vunpack.c.l.b16 %v1893
    %v1965 = vunpack.c.l.b16 %v1894
    %v1966 = vunpack.c.l.b16 %v1895
    %v1967 = vunpack.c.l.b16 %v1896
    %v1968 = vunpack.c.l.b16 %v1897
    %v1969 = vunpack.c.l.b16 %v1898
    %v1970 = vunpack.c.l.b16 %v1899
    %v1971 = vunpack.c.l.b16 %v1900
    %v1972 = vunpack.c.l.b16 %v1901
    %v1973 = vunpack.c.l.b16 %v1902
    %v1974 = vunpack.c.l.b16 %v1903
    %v1975 = vunpack.c.l.b16 %v1904
    %v1976 = vunpack.c.l.b16 %v1905
    %v1977 = vunpack.c.l.b16 %v1906
    %v1978 = vunpack.c.l.b16 %v1907
    %v1979 = vunpack.c.l.b16 %v1908
    %v1980 = vunpack.c.l.b16 %v1909
    %v1981 = vpack.c.b16 %v1950, %v1949
    %v1982 = vpack.c.b16 %v1952, %v1951
    %v1983 = vpack.c.b16 %v1954, %v1953
    %v1984 = vpack.c.b16 %v1956, %v1955
    %v1985 = vpack.c.b16 %v1958, %v1957
    %v1986 = vpack.c.b16 %v1960, %v1959
    %v1987 = vpack.c.b16 %v1962, %v1961
    %v1988 = vpack.c.b16 %v1964, %v1963
    %v1989 = vpack.c.b16 %v1966, %v1965
    %v1990 = vpack.c.b16 %v1968, %v1967
    %v1991 = vpack.c.b16 %v1970, %v1969
    %v1992 = vpack.c.b16 %v1972, %v1971
    %v1993 = vpack.c.b16 %v1974, %v1973
    %v1994 = vpack.c.b16 %v1976, %v1975
    %v1995 = vpack.c.b16 %v1978, %v1977
    %v1996 = vpack.c.b16 %v1980, %v1979
    %2013 = vmatprep.subr.bf16.mxu0 0
    %2014 = vmatpush1.bf16.msra.mxu0 %v1981
    %2015 = vmatprep.subr.bf16.mxu0 0
    %2016 = vmatpush1.bf16.msra.mxu0 %v1982
    %2017 = vmatprep.subr.bf16.mxu0 0
    %2018 = vmatpush1.bf16.msra.mxu0 %v1983
    %2019 = vmatprep.subr.bf16.mxu0 0
    %2020 = vmatpush1.bf16.msra.mxu0 %v1984
    %2021 = vmatprep.subr.bf16.mxu0 0
    %2022 = vmatpush1.bf16.msra.mxu0 %v1985
    %2023 = vmatprep.subr.bf16.mxu0 0
    %2024 = vmatpush1.bf16.msra.mxu0 %v1986
    %2025 = vmatprep.subr.bf16.mxu0 0
    %2026 = vmatpush1.bf16.msra.mxu0 %v1987
    %2027 = vmatprep.subr.bf16.mxu0 0
    %2028 = vmatpush1.bf16.msra.mxu0 %v1988
    %2029 = vmatprep.subr.bf16.mxu0 0
    %2030 = vmatpush1.bf16.msra.mxu0 %v1989
    %2031 = vmatprep.subr.bf16.mxu0 0
    %2032 = vmatpush1.bf16.msra.mxu0 %v1990
    %2033 = vmatprep.subr.bf16.mxu0 0
    %2034 = vmatpush1.bf16.msra.mxu0 %v1991
    %2035 = vmatprep.subr.bf16.mxu0 0
    %2036 = vmatpush1.bf16.msra.mxu0 %v1992
    %2037 = vmatprep.subr.bf16.mxu0 0
    %2038 = vmatpush1.bf16.msra.mxu0 %v1993
    %2039 = vmatprep.subr.bf16.mxu0 0
    %2040 = vmatpush1.bf16.msra.mxu0 %v1994
    %2041 = vmatprep.subr.bf16.mxu0 0
    %2042 = vmatpush1.bf16.msra.mxu0 %v1995
    %2043 = vmatprep.subr.bf16.mxu0 0
    %2044 = vmatpush1.bf16.msra.mxu0 %v1996
    %2045 = vmatprep.mubr.bf16.mxu0 %v1870
    %2046 = vmatmul.mubr.bf16.gmra.mrb[0].mxu0 %v1738
    %v2047 = vpop.f32.mrb[0].mxu0
    %v2048 = vadd.f32 %v1915, %v2047
    %v2049 = vpop.f32.mrb[0].mxu0
    %v2050 = vpop.f32.mrb[0].mxu0
    %v2051 = vadd.f32 %v1915, %v2050
    %v2052 = vpop.f32.mrb[0].mxu0
    %2053 = vmatprep.mubr.bf16.mxu0 %v1871
    %2054 = vmatmul.mubr.bf16.gmra.mrb[0].mxu0 %v1739
    %v2055 = vpop.f32.mrb[0].mxu0
    %v2056 = vadd.f32 %v1915, %v2055
    %v2057 = vpop.f32.mrb[0].mxu0
    %v2058 = vpop.f32.mrb[0].mxu0
    %v2059 = vadd.f32 %v1915, %v2058
    %v2060 = vpop.f32.mrb[0].mxu0
    %2061 = vmatprep.mubr.bf16.mxu0 %v1872
    %2062 = vmatmul.mubr.bf16.gmra.mrb[0].mxu0 %v1740
    %v2063 = vpop.f32.mrb[0].mxu0
    %v2064 = vadd.f32 %v1915, %v2063
    %v2065 = vpop.f32.mrb[0].mxu0
    %v2066 = vpop.f32.mrb[0].mxu0
    %v2067 = vadd.f32 %v1915, %v2066
    %v2068 = vpop.f32.mrb[0].mxu0
    %2069 = vmatprep.mubr.bf16.mxu0 %v1873
    %2070 = vmatmul.mubr.bf16.gmra.mrb[0].mxu0 %v1741
    %v2071 = vpop.f32.mrb[0].mxu0
    %v2072 = vadd.f32 %v1915, %v2071
    %v2073 = vpop.f32.mrb[0].mxu0
    %v2074 = vpop.f32.mrb[0].mxu0
    %v2075 = vadd.f32 %v1915, %v2074
    %v2076 = vpop.f32.mrb[0].mxu0
    %2077 = vmatprep.mubr.bf16.mxu0 %v1874
    %2078 = vmatmul.mubr.bf16.gmra.mrb[0].mxu0 %v1742
    %v2079 = vpop.f32.mrb[0].mxu0
    %v2080 = vadd.f32 %v1915, %v2079
    %v2081 = vpop.f32.mrb[0].mxu0
    %v2082 = vpop.f32.mrb[0].mxu0
    %v2083 = vadd.f32 %v1915, %v2082
    %v2084 = vpop.f32.mrb[0].mxu0
    %2085 = vmatprep.mubr.bf16.mxu0 %v1875
    %2086 = vmatmul.mubr.bf16.gmra.mrb[0].mxu0 %v1743
    %v2087 = vpop.f32.mrb[0].mxu0
    %v2088 = vadd.f32 %v1915, %v2087
    %v2089 = vpop.f32.mrb[0].mxu0
    %v2090 = vpop.f32.mrb[0].mxu0
    %v2091 = vadd.f32 %v1915, %v2090
    %v2092 = vpop.f32.mrb[0].mxu0
    %2093 = vmatprep.mubr.bf16.mxu0 %v1876
    %2094 = vmatmul.mubr.bf16.gmra.mrb[0].mxu0 %v1744
    %v2095 = vpop.f32.mrb[0].mxu0
    %v2096 = vadd.f32 %v1915, %v2095
    %v2097 = vpop.f32.mrb[0].mxu0
    %v2098 = vpop.f32.mrb[0].mxu0
    %v2099 = vadd.f32 %v1915, %v2098
    %v2100 = vpop.f32.mrb[0].mxu0
    %2101 = vmatprep.mubr.bf16.mxu0 %v1877
    %2102 = vmatmul.mubr.bf16.gmra.mrb[0].mxu0 %v1745
    %v2103 = vpop.f32.mrb[0].mxu0
    %v2104 = vadd.f32 %v1915, %v2103
    %v2105 = vpop.f32.mrb[0].mxu0
    %v2106 = vpop.f32.mrb[0].mxu0
    %v2107 = vadd.f32 %v1915, %v2106
    %v2108 = vpop.f32.mrb[0].mxu0
    %2109 = vdwg.mxu0
    %v2110 = vmax.f32 %v2048, 0.0
    %v2111 = vmax.f32 %v2051, 0.0
    %v2112 = vmax.f32 %v2056, 0.0
    %v2113 = vmax.f32 %v2059, 0.0
    %v2114 = vmax.f32 %v2064, 0.0
    %v2115 = vmax.f32 %v2067, 0.0
    %v2116 = vmax.f32 %v2072, 0.0
    %v2117 = vmax.f32 %v2075, 0.0
    %v2118 = vmax.f32 %v2080, 0.0
    %v2119 = vmax.f32 %v2083, 0.0
    %v2120 = vmax.f32 %v2088, 0.0
    %v2121 = vmax.f32 %v2091, 0.0
    %v2122 = vmax.f32 %v2096, 0.0
    %v2123 = vmax.f32 %v2099, 0.0
    %v2124 = vmax.f32 %v2104, 0.0
    %v2125 = vmax.f32 %v2107, 0.0
    %v2126 = vpack.c.bf16 %v2111, %v2110
    %v2127 = vpack.c.bf16 %v2113, %v2112
    %v2128 = vpack.c.bf16 %v2115, %v2114
    %v2129 = vpack.c.bf16 %v2117, %v2116
    %v2130 = vpack.c.bf16 %v2119, %v2118
    %v2131 = vpack.c.bf16 %v2121, %v2120
    %v2132 = vpack.c.bf16 %v2123, %v2122
    %v2133 = vpack.c.bf16 %v2125, %v2124
    %v2134 = vld [vmem:[#allocation7] sm:$0xf]
    %v2135 = vld [vmem:[#allocation7 + $0x4] sm:$0xf]
    %v2136 = vld [vmem:[#allocation7 + $0x8] sm:$0xf]
    %v2137 = vld [vmem:[#allocation7 + $0xc] sm:$0xf]
    %v2138 = vld [vmem:[#allocation7 + $0x10] sm:$0xf]
    %v2139 = vld [vmem:[#allocation7 + $0x14] sm:$0xf]
    %v2140 = vld [vmem:[#allocation7 + $0x18] sm:$0xf]
    %v2141 = vld [vmem:[#allocation7 + $0x1c] sm:$0xf]
    %v2142 = vld [vmem:[#allocation7 + $0x20] sm:$0xf]
    %v2143 = vld [vmem:[#allocation7 + $0x24] sm:$0xf]
    %v2144 = vld [vmem:[#allocation7 + $0x28] sm:$0xf]
    %v2145 = vld [vmem:[#allocation7 + $0x2c] sm:$0xf]
    %v2146 = vld [vmem:[#allocation7 + $0x30] sm:$0xf]
    %v2147 = vld [vmem:[#allocation7 + $0x34] sm:$0xf]
    %v2148 = vld [vmem:[#allocation7 + $0x38] sm:$0xf]
    %v2149 = vld [vmem:[#allocation7 + $0x3c] sm:$0xf]
    %v2150 = vld [vmem:[%s11] sm:$0x1]
    %v2152 = vlaneseq
    %v2153 = vshrl.u32 %v2152, 7
    %v2154 = vsub.s32 0, %v2153
    %v2155 = vrot.slane %v2150, %v2154
    %v2173 = vunpack.c.l.b16 %v2134
    %v2174 = vunpack.c.l.b16 %v2135
    %v2175 = vunpack.c.l.b16 %v2136
    %v2176 = vunpack.c.l.b16 %v2137
    %v2177 = vunpack.c.l.b16 %v2138
    %v2178 = vunpack.c.l.b16 %v2139
    %v2179 = vunpack.c.l.b16 %v2140
    %v2180 = vunpack.c.l.b16 %v2141
    %v2181 = vunpack.c.l.b16 %v2142
    %v2182 = vunpack.c.l.b16 %v2143
    %v2183 = vunpack.c.l.b16 %v2144
    %v2184 = vunpack.c.l.b16 %v2145
    %v2185 = vunpack.c.l.b16 %v2146
    %v2186 = vunpack.c.l.b16 %v2147
    %v2187 = vunpack.c.l.b16 %v2148
    %v2188 = vunpack.c.l.b16 %v2149
    %v2189 = vpack.c.b16 %v2174, %v2173
    %v2190 = vpack.c.b16 %v2176, %v2175
    %v2191 = vpack.c.b16 %v2178, %v2177
    %v2192 = vpack.c.b16 %v2180, %v2179
    %v2193 = vpack.c.b16 %v2182, %v2181
    %v2194 = vpack.c.b16 %v2184, %v2183
    %v2195 = vpack.c.b16 %v2186, %v2185
    %v2196 = vpack.c.b16 %v2188, %v2187
    %2205 = vmatprep.subr.bf16.mxu0 0
    %2206 = vmatpush1.bf16.msra.mxu0 %v2189
    %2207 = vmatprep.subr.bf16.mxu0 0
    %2208 = vmatpush1.bf16.msra.mxu0 %v2190
    %2209 = vmatprep.subr.bf16.mxu0 0
    %2210 = vmatpush1.bf16.msra.mxu0 %v2191
    %2211 = vmatprep.subr.bf16.mxu0 0
    %2212 = vmatpush1.bf16.msra.mxu0 %v2192
    %2213 = vmatprep.subr.bf16.mxu0 0
    %2214 = vmatpush1.bf16.msra.mxu0 %v2193
    %2215 = vmatprep.subr.bf16.mxu0 0
    %2216 = vmatpush1.bf16.msra.mxu0 %v2194
    %2217 = vmatprep.subr.bf16.mxu0 0
    %2218 = vmatpush1.bf16.msra.mxu0 %v2195
    %2219 = vmatprep.subr.bf16.mxu0 0
    %2220 = vmatpush1.bf16.msra.mxu0 %v2196
    %2221 = vmatprep.subr.bf16.mxu0 0
    %2222 = vmatpush1.bf16.msra.mxu0 0
    %2223 = vmatprep.subr.bf16.mxu0 0
    %2224 = vmatpush1.bf16.msra.mxu0 0
    %2225 = vmatprep.subr.bf16.mxu0 0
    %2226 = vmatpush1.bf16.msra.mxu0 0
    %2227 = vmatprep.subr.bf16.mxu0 0
    %2228 = vmatpush1.bf16.msra.mxu0 0
    %2229 = vmatprep.subr.bf16.mxu0 0
    %2230 = vmatpush1.bf16.msra.mxu0 0
    %2231 = vmatprep.subr.bf16.mxu0 0
    %2232 = vmatpush1.bf16.msra.mxu0 0
    %2233 = vmatprep.subr.bf16.mxu0 0
    %2234 = vmatpush1.bf16.msra.mxu0 0
    %2235 = vmatprep.subr.bf16.mxu0 0
    %2236 = vmatpush1.bf16.msra.mxu0 0
    %2237 = vmatprep.mubr.bf16.mxu0 0
    %2238 = vmatmul.mubr.bf16.gmra.mrb[0].mxu0 %v2126
    %v2239 = vpop.f32.mrb[0].mxu0
    %v2240 = vadd.f32 %v2155, %v2239
    %v2241 = vpop.f32.mrb[0].mxu0
    %v2242 = vpop.f32.mrb[0].mxu0
    %v2243 = vadd.f32 %v2155, %v2242
    %v2244 = vpop.f32.mrb[0].mxu0
    %2245 = vmatprep.mubr.bf16.mxu0 0
    %2246 = vmatmul.mubr.bf16.gmra.mrb[0].mxu0 %v2127
    %v2247 = vpop.f32.mrb[0].mxu0
    %v2248 = vadd.f32 %v2155, %v2247
    %v2249 = vpop.f32.mrb[0].mxu0
    %v2250 = vpop.f32.mrb[0].mxu0
    %v2251 = vadd.f32 %v2155, %v2250
    %v2252 = vpop.f32.mrb[0].mxu0
    %2253 = vmatprep.mubr.bf16.mxu0 0
    %2254 = vmatmul.mubr.bf16.gmra.mrb[0].mxu0 %v2128
    %v2255 = vpop.f32.mrb[0].mxu0
    %v2256 = vadd.f32 %v2155, %v2255
    %v2257 = vpop.f32.mrb[0].mxu0
    %v2258 = vpop.f32.mrb[0].mxu0
    %v2259 = vadd.f32 %v2155, %v2258
    %v2260 = vpop.f32.mrb[0].mxu0
    %2261 = vmatprep.mubr.bf16.mxu0 0
    %2262 = vmatmul.mubr.bf16.gmra.mrb[0].mxu0 %v2129
    %v2263 = vpop.f32.mrb[0].mxu0
    %v2264 = vadd.f32 %v2155, %v2263
    %v2265 = vpop.f32.mrb[0].mxu0
    %v2266 = vpop.f32.mrb[0].mxu0
    %v2267 = vadd.f32 %v2155, %v2266
    %v2268 = vpop.f32.mrb[0].mxu0
    %2269 = vmatprep.mubr.bf16.mxu0 0
    %2270 = vmatmul.mubr.bf16.gmra.mrb[0].mxu0 %v2130
    %v2271 = vpop.f32.mrb[0].mxu0
    %v2272 = vadd.f32 %v2155, %v2271
    %v2273 = vpop.f32.mrb[0].mxu0
    %v2274 = vpop.f32.mrb[0].mxu0
    %v2275 = vadd.f32 %v2155, %v2274
    %v2276 = vpop.f32.mrb[0].mxu0
    %2277 = vmatprep.mubr.bf16.mxu0 0
    %2278 = vmatmul.mubr.bf16.gmra.mrb[0].mxu0 %v2131
    %v2279 = vpop.f32.mrb[0].mxu0
    %v2280 = vadd.f32 %v2155, %v2279
    %v2281 = vpop.f32.mrb[0].mxu0
    %v2282 = vpop.f32.mrb[0].mxu0
    %v2283 = vadd.f32 %v2155, %v2282
    %v2284 = vpop.f32.mrb[0].mxu0
    %2285 = vmatprep.mubr.bf16.mxu0 0
    %2286 = vmatmul.mubr.bf16.gmra.mrb[0].mxu0 %v2132
    %v2287 = vpop.f32.mrb[0].mxu0
    %v2288 = vadd.f32 %v2155, %v2287
    %v2289 = vpop.f32.mrb[0].mxu0
    %v2290 = vpop.f32.mrb[0].mxu0
    %v2291 = vadd.f32 %v2155, %v2290
    %v2292 = vpop.f32.mrb[0].mxu0
    %2293 = vmatprep.mubr.bf16.mxu0 0
    %2294 = vmatmul.mubr.bf16.gmra.mrb[0].mxu0 %v2133
    %v2295 = vpop.f32.mrb[0].mxu0
    %v2296 = vadd.f32 %v2155, %v2295
    %v2297 = vpop.f32.mrb[0].mxu0
    %v2298 = vpop.f32.mrb[0].mxu0
    %v2299 = vadd.f32 %v2155, %v2298
    %v2300 = vpop.f32.mrb[0].mxu0
    %2301 = vdwg.mxu0
    %v2302 = vmax.f32 %v2240, 0.0
    %v2303 = vmax.f32 %v2243, 0.0
    %v2304 = vmax.f32 %v2248, 0.0
    %v2305 = vmax.f32 %v2251, 0.0
    %v2306 = vmax.f32 %v2256, 0.0
    %v2307 = vmax.f32 %v2259, 0.0
    %v2308 = vmax.f32 %v2264, 0.0
    %v2309 = vmax.f32 %v2267, 0.0
    %v2310 = vmax.f32 %v2272, 0.0
    %v2311 = vmax.f32 %v2275, 0.0
    %v2312 = vmax.f32 %v2280, 0.0
    %v2313 = vmax.f32 %v2283, 0.0
    %v2314 = vmax.f32 %v2288, 0.0
    %v2315 = vmax.f32 %v2291, 0.0
    %v2316 = vmax.f32 %v2296, 0.0
    %v2317 = vmax.f32 %v2299, 0.0
    %v2318 = vpack.c.bf16 %v2303, %v2302
    %v2319 = vpack.c.bf16 %v2305, %v2304
    %v2320 = vpack.c.bf16 %v2307, %v2306
    %v2321 = vpack.c.bf16 %v2309, %v2308
    %v2322 = vpack.c.bf16 %v2311, %v2310
    %v2323 = vpack.c.bf16 %v2313, %v2312
    %v2324 = vpack.c.bf16 %v2315, %v2314
    %v2325 = vpack.c.bf16 %v2317, %v2316
    %v2326 = vld [vmem:[%s12] sm:$0xf]
    %v2327 = vld [vmem:[#allocation2] sm:$0x1]
    %v2329 = vlaneseq
    %v2330 = vshrl.u32 %v2329, 7
    %v2331 = vsub.s32 0, %v2330
    %v2332 = vrot.slane %v2327, %v2331
    %2333 = vset.pattern.permute.xlu0 0
    %2334 = vperm.xlu0 %2333, %v2332
    %v2335 = vpop.permute.xlu0 %2334
    %2337 = vmatprep.subr.bf16.mxu0 0
    %2338 = vmatpush1.bf16.xpose.msra.mxu0 %v2318
    %2339 = vmatprep.subr.bf16.mxu0 0
    %2340 = vmatpush1.bf16.xpose.msra.mxu0 %v2319
    %2341 = vmatprep.subr.bf16.mxu0 0
    %2342 = vmatpush1.bf16.xpose.msra.mxu0 %v2320
    %2343 = vmatprep.subr.bf16.mxu0 0
    %2344 = vmatpush1.bf16.xpose.msra.mxu0 %v2321
    %2345 = vmatprep.subr.bf16.mxu0 0
    %2346 = vmatpush1.bf16.xpose.msra.mxu0 %v2322
    %2347 = vmatprep.subr.bf16.mxu0 0
    %2348 = vmatpush1.bf16.xpose.msra.mxu0 %v2323
    %2349 = vmatprep.subr.bf16.mxu0 0
    %2350 = vmatpush1.bf16.xpose.msra.mxu0 %v2324
    %2351 = vmatprep.subr.bf16.mxu0 0
    %2352 = vmatpush1.bf16.xpose.msra.mxu0 %v2325
    %2353 = vmatprep.subr.bf16.mxu0 0
    %2354 = vmatpush1.bf16.xpose.msra.mxu0 0
    %2355 = vmatprep.subr.bf16.mxu0 0
    %2356 = vmatpush1.bf16.xpose.msra.mxu0 0
    %2357 = vmatprep.subr.bf16.mxu0 0
    %2358 = vmatpush1.bf16.xpose.msra.mxu0 0
    %2359 = vmatprep.subr.bf16.mxu0 0
    %2360 = vmatpush1.bf16.xpose.msra.mxu0 0
    %2361 = vmatprep.subr.bf16.mxu0 0
    %2362 = vmatpush1.bf16.xpose.msra.mxu0 0
    %2363 = vmatprep.subr.bf16.mxu0 0
    %2364 = vmatpush1.bf16.xpose.msra.mxu0 0
    %2365 = vmatprep.subr.bf16.mxu0 0
    %2366 = vmatpush1.bf16.xpose.msra.mxu0 0
    %2367 = vmatprep.subr.bf16.mxu0 0
    %2368 = vmatpush1.bf16.xpose.msra.mxu0 0
    %2369 = vmatprep.mubr.bf16.mxu0 0
    %2370 = vmatmul.mubr.bf16.gmra.mrb[0].mxu0 %v2326
    %v2371 = vpop.f32.mrb[0].mxu0
    %v2372 = vadd.f32 %v2335, %v2371
    %v2373 = vpop.f32.mrb[0].mxu0
    %v2374 = vpop.f32.mrb[0].mxu0
    %v2375 = vpop.f32.mrb[0].mxu0
    %2376 = vdwg.mxu0
    %2377 = vst [vmem:[%s16] sm:$0xff] %v2372
    // Predicated region
    $region78: #{single_edge_model_forward.1} parent=1 // pred_check
      _
    $region79: #{single_edge_model_forward.1} parent=1 // pred_check_branch
      %2379 = sbr.rel (0) target = $region81
    $region80: #{single_edge_model_forward.1} parent=1 // pred_region
      _
    $region81: #{single_edge_model_forward.1} parent=1 // pred_fallthru
      _
    // Predicated region
    $region82: #{single_edge_model_forward.1} parent=1 // pred_check
      _
    $region83: #{single_edge_model_forward.1} parent=1 // pred_check_branch
      %2381 = sbr.rel (0) target = $region85
    $region84: #{single_edge_model_forward.1} parent=1 // pred_region
      _
    $region85: #{single_edge_model_forward.1} parent=1 // pred_fallthru
      _
    %2382 = vsyncpa [#allocation4], 1
    %2383 = vsyncpa [#allocation6], 1

</llo_original>
